<compile_context>
chip_gen: v6e
topology: v6e:2x2x1
jax: 0.10.0
libtpu: 0.0.40
codegen_flags: <defaults>
</compile_context>

<pallas_src>
import functools

import jax
import jax.numpy as jnp
from jax import lax
from jax.experimental import pallas as pl
from jax.experimental.pallas import tpu as pltpu


def _gated_pooling_kernel(s_ref, x_ref, wT_ref, b_ref, out_ref, p_ref, acc_ref,
                          *, alpha, n_iter, seq_len, num_t_chunks, need_t_mask):
    j = pl.program_id(1)

    # ---- entmax_bisect over T, computed once per batch tile -------------------
    # Lane-dense layout: scores are (Ts, B_tile) with the batch in lanes, so each
    # bisection step touches ~B_tile/128 * T/8 full vregs and reduces over
    # sublanes. Specialized for alpha == 2.0 at trace time (1/(alpha-1) == 1 so
    # the pow is a plain relu). n_iter=30 (< library's 50) is enough in f32: the
    # bracket width is <= 1 and 2^-30 is below f32 resolution near tau.
    @pl.when(j == 0)
    def _():
        s = s_ref[...].astype(jnp.float32)                       # (Ts, Bt)
        inv_am1 = 1.0 / (alpha - 1.0)

        def _p(z):
            r = jnp.maximum(z, 0.0)
            if alpha == 2.0:                                      # trace-time branch
                return r
            return r ** inv_am1

        Xs = s * (alpha - 1.0)
        max_val = jnp.max(Xs, axis=0, keepdims=True)              # (1, Bt)
        tau_lo = max_val - 1.0                                    # _gp(1, alpha)
        tau_hi = max_val - (1.0 / seq_len) ** (alpha - 1.0)       # _gp(1/T, alpha)
        f_lo = jnp.sum(_p(Xs - tau_lo), axis=0, keepdims=True) - 1.0
        dm0 = tau_hi - tau_lo

        def body(_, carry):
            tau_lo_c, dm_c, _tau_prev = carry
            dm_c = dm_c * 0.5
            tau_m = tau_lo_c + dm_c
            f_m = jnp.sum(_p(Xs - tau_m), axis=0, keepdims=True) - 1.0
            tau_lo_c = jnp.where((f_m * f_lo) >= 0.0, tau_m, tau_lo_c)
            return (tau_lo_c, dm_c, tau_m)

        # Short fixed serial chain on (1, Bt) vectors: fully unrolled.
        _, _, tau = lax.fori_loop(0, n_iter, body, (tau_lo, dm0, tau_lo),
                                  unroll=True)
        p_m = _p(Xs - tau)
        denom = jnp.maximum(jnp.sum(p_m, axis=0, keepdims=True), 1e-30)
        p_ref[...] = p_m / denom                                  # (Ts, Bt)
        acc_ref[...] = jnp.zeros_like(acc_ref)

    # ---- per-T-chunk gate + weighted accumulation ------------------------------
    x = x_ref[...]                                                # (Bt, Tc, D)
    bt, tc, d = x.shape
    if need_t_mask:
        # The last T chunk may read past the real sequence: zero those rows so
        # out-of-bounds garbage (possibly NaN/Inf) never reaches the accumulator.
        t_idx = lax.broadcasted_iota(jnp.int32, (1, tc, 1), 1)
        x = jnp.where(j * tc + t_idx < seq_len, x, jnp.zeros_like(x))

    # gate = sigmoid(x @ W^T + b): bf16 MXU matmul with f32 accumulation.
    x2d = x.reshape(bt * tc, d).astype(jnp.bfloat16)
    gate = jnp.dot(x2d, wT_ref[...], preferred_element_type=jnp.float32)
    gate = jax.nn.sigmoid(gate + b_ref[...])                      # (Bt*Tc, D) f32
    gate = gate.reshape(bt, tc, d)
    # TODO(synk): on bf16-capable VPUs (v6e/v7x) the sigmoid + products could run
    # in bf16 (keeping only the sum over T in f32) to halve EUP/VALU pressure.

    # Attention weights for this chunk: sublane-slice the resident (Ts, Bt)
    # weights and transpose the tiny block to (Bt, Tc) for broadcasting.
    if num_t_chunks == 1:
        p_chunk = p_ref[...]
    else:
        p_chunk = p_ref[pl.ds(pl.multiple_of(j * tc, 8), tc), :]
    w = jnp.transpose(p_chunk)[:, :, None]                        # (Bt, Tc, 1)

    acc_ref[...] += jnp.sum(w * x.astype(jnp.float32) * gate, axis=1)

    @pl.when(j == num_t_chunks - 1)
    def _():
        out_ref[...] = acc_ref[...].astype(out_ref.dtype)

    # TODO(synk): return_weights / return_entropy outputs are not emitted; the
    # default forward returns pooled only.


def _round_up(v, m):
    return ((v + m - 1) // m) * m


def _cdiv(a, b):
    return -(-a // b)


def _vmem_budget():
    """Generation-aware per-step tile budget and scoped-VMEM limit."""
    cap = 64 * 1024 * 1024
    try:
        cap = int(pltpu.get_tpu_info().vmem_capacity_bytes)
    except Exception:
        pass
    if cap >= 96 * 1024 * 1024:                 # v5e / v6e: 128 MiB physical VMEM
        return 28 * 1024 * 1024, 64 * 1024 * 1024
    return 14 * 1024 * 1024, 40 * 1024 * 1024   # v7x: 64 MiB physical


def _choose_tiles(B, T, D, x_itemsize, budget):
    """Pick (B_tile, nB, Tc, nT, Ts) so the per-step working set fits `budget`.

    Accounts for the resident bf16 Linear weight + bias, the double-buffered x
    chunk, ~4 f32 in-kernel temporaries, the resident scores column / attention
    scratch and the output block + accumulator."""
    resident = 2 * (2 * D * D) + 2 * (4 * D)    # weight (bf16) + bias, worst-case 2 bufs
    avail = max(budget - resident, 2 * 1024 * 1024)

    def rows_that_fit(tc, ts):
        per_row = ((2 * x_itemsize + 16) * tc * D   # x (x2 buffers) + ~4 f32 temporaries
                   + 3 * 4 * ts                     # scores (x2 buffers) + p scratch
                   + 3 * 4 * D)                     # out block (x2) + f32 accumulator
        return avail // per_row

    rows_needed = min(B, 128)
    # Prefer the whole T in one chunk; halve (to a multiple of 8) until the
    # needed number of batch rows fits.
    Tc = T
    while Tc > 8 and rows_that_fit(Tc, _round_up(T, 8)) < rows_needed:
        Tc = max(8, _round_up(Tc // 2, 8))
    nT = _cdiv(T, Tc)
    Ts = T if nT == 1 else nT * Tc

    rows = rows_that_fit(Tc, Ts)
    if rows >= B:
        # Whole batch fits in one block; still split large batches into >=2
        # parallel steps so both v7x TensorCores get work.
        B_tile = _round_up(_cdiv(B, 2), 128) if B >= 256 else B
    elif B > 128:
        B_tile = max(128, (rows // 128) * 128)   # lane-dense scores => multiple of 128
    else:
        B_tile = B
    nB = _cdiv(B, B_tile)
    return B_tile, nB, Tc, nT, Ts


def _const_spec(shape):
    """Resident block (constant index_map): single-buffered when supported."""
    idx = lambda i, j: (0,) * len(shape)
    try:
        return pl.BlockSpec(shape, idx, pipeline_mode=pl.Buffered(1))
    except Exception:
        return pl.BlockSpec(shape, idx)


def gated_pooling(x, attn_scores, W, b, *, alpha=2.0, n_iter=30):
    """Eval-mode GatedPooling forward.

    x: (B, T, D); attn_scores: (B, T, 1); W: (D, D) [out, in]; b: (D,).
    Returns pooled: (B, D) float32.
    """
    B, T, D = x.shape

    budget, vmem_limit = _vmem_budget()
    B_tile, nB, Tc, nT, Ts = _choose_tiles(B, T, D, jnp.dtype(x.dtype).itemsize,
                                           budget)
    need_t_mask = (nT * Tc != T) if nT > 1 else False

    # Tiny transposed scores (T, B): batch in lanes for the in-kernel bisection.
    # Only the scores are ever padded (never the big x tensor), with a large
    # negative so padded positions receive exactly zero entmax weight; padded
    # batch lanes only affect rows that are discarded by the (B, D) out_shape.
    s = jnp.transpose(attn_scores.reshape(B, T).astype(jnp.float32))   # (T, B)
    Bs = nB * B_tile
    if Ts != T or Bs != B:
        s = jnp.full((Ts, Bs), -1e30, jnp.float32).at[:T, :B].set(s)

    # Pre-transposed Linear weight in bf16 (MXU matmul accumulates in f32).
    wT = jnp.transpose(jnp.asarray(W, jnp.float32)).astype(jnp.bfloat16)  # (D_in, D_out)
    b2 = jnp.asarray(b, jnp.float32).reshape(1, D)

    kernel = functools.partial(
        _gated_pooling_kernel, alpha=float(alpha), n_iter=int(n_iter),
        seq_len=T, num_t_chunks=nT, need_t_mask=need_t_mask)

    out = pl.pallas_call(
        kernel,
        out_shape=jax.ShapeDtypeStruct((B, D), jnp.float32),
        grid_spec=pltpu.PrefetchScalarGridSpec(
            num_scalar_prefetch=0,
            grid=(nB, nT),
            in_specs=[
                pl.BlockSpec((Ts, B_tile), lambda i, j: (0, i)),        # scores (T,B)
                pl.BlockSpec((B_tile, Tc, D), lambda i, j: (i, j, 0)),  # x chunk
                _const_spec((D, D)),                                    # weight (resident)
                _const_spec((1, D)),                                    # bias (resident)
            ],
            out_specs=pl.BlockSpec((B_tile, D), lambda i, j: (i, 0)),
            scratch_shapes=[
                pltpu.VMEM((Ts, B_tile), jnp.float32),   # entmax weights
                pltpu.VMEM((B_tile, D), jnp.float32),    # pooled accumulator
            ],
        ),
        compiler_params=pltpu.CompilerParams(
            dimension_semantics=("parallel", "arbitrary"),
            vmem_limit_bytes=vmem_limit,
        ),
    )(s, x, wT, b2)
    return out


def _reference(x, attn_scores, W, b, alpha=2.0, n_iter=50):
    # Pure-JAX f32 reference of the eval-mode forward (entmax_bisect, 50 iters).
    B, T, D = x.shape
    Xs = attn_scores.reshape(B, T).astype(jnp.float32) * (alpha - 1.0)
    max_val = jnp.max(Xs, axis=1, keepdims=True)
    tau_lo = max_val - 1.0
    tau_hi = max_val - (1.0 / T) ** (alpha - 1.0)
    inv = 1.0 / (alpha - 1.0)
    f_lo = jnp.sum(jnp.maximum(Xs - tau_lo, 0.0) ** inv, axis=1, keepdims=True) - 1.0
    dm = tau_hi - tau_lo
    tau_m = tau_lo
    for _ in range(n_iter):
        dm = dm * 0.5
        tau_m = tau_lo + dm
        p_m = jnp.maximum(Xs - tau_m, 0.0) ** inv
        f_m = jnp.sum(p_m, axis=1, keepdims=True) - 1.0
        tau_lo = jnp.where((f_m * f_lo) >= 0.0, tau_m, tau_lo)
    p_m = jnp.maximum(Xs - tau_m, 0.0) ** inv
    p = p_m / jnp.sum(p_m, axis=1, keepdims=True)
    gate = jax.nn.sigmoid(x.astype(jnp.float32) @ W.T + b)
    return jnp.sum(p[:, :, None] * x.astype(jnp.float32) * gate, axis=1)


if __name__ == "__main__":
    B, T, D = 2, 8, 32
    key = jax.random.PRNGKey(0)
    kx, ks, kw, kb = jax.random.split(key, 4)

    x = jax.random.normal(kx, (B, T, D), dtype=jnp.float32)
    attn_scores = jax.random.normal(ks, (B, T, 1), dtype=jnp.float32)
    # Deterministic Linear(input_dim, input_dim) params.
    W = jax.random.normal(kw, (D, D), dtype=jnp.float32) * (1.0 / jnp.sqrt(D))
    b = jax.random.normal(kb, (D,), dtype=jnp.float32) * 0.01

    pooled = jax.block_until_ready(gated_pooling(x, attn_scores, W, b))
    ref = _reference(x, attn_scores, W, b)

    assert pooled.shape == (B, D)
    # bf16 gate matmul (f32 accumulation) slightly perturbs the gate path,
    # hence the loosened tolerance vs the pure-f32 reference.
    assert jnp.allclose(pooled, ref, atol=3e-2, rtol=3e-2), "mismatch vs reference"

    print("KERNEL_OK")
</pallas_src>

<mosaic_0001>
module attributes {stable_mosaic.version = 11 : i64} {
  func.func @_gated_pooling_kernel(%arg0: i32, %arg1: i32, %arg2: memref<8x2xf32, #tpu.memory_space<vmem>>, %arg3: memref<2x8x32xf32, #tpu.memory_space<vmem>>, %arg4: memref<32x32xbf16, #tpu.memory_space<vmem>>, %arg5: memref<1x32xf32, #tpu.memory_space<vmem>>, %arg6: memref<2x32xf32, #tpu.memory_space<vmem>>, %arg7: memref<8x2xf32, #tpu.memory_space<vmem>>, %arg8: memref<2x32xf32, #tpu.memory_space<vmem>>) attributes {dimension_semantics = [#tpu.dimension_semantics<parallel>, #tpu.dimension_semantics<arbitrary>], iteration_bounds = array<i64: 1, 1>, scalar_prefetch = 0 : i64, scratch_operands = 2 : i64, tpu.core_type = #tpu.core_type<tc>, window_params = [{transform_indices = @transform_0, window_bounds = array<i64: 8, 2>}, {transform_indices = @transform_1, window_bounds = array<i64: 2, 8, 32>}, {pipeline_mode = #tpu.pipeline_mode<synchronous>, transform_indices = @transform_2, window_bounds = array<i64: 32, 32>}, {pipeline_mode = #tpu.pipeline_mode<synchronous>, transform_indices = @transform_3, window_bounds = array<i64: 1, 32>}, {transform_indices = @transform_4, window_bounds = array<i64: 2, 32>}]} {
    %c0_i32 = arith.constant 0 : i32
    %0 = arith.cmpi eq, %arg1, %c0_i32 : i32
    %1 = arith.extui %0 : i1 to i32
    %c0_i32_0 = arith.constant 0 : i32
    %2 = arith.cmpi ne, %1, %c0_i32_0 : i32
    scf.if %2 {
      %c0_17 = arith.constant 0 : index
      %c0_18 = arith.constant 0 : index
      %30 = vector.load %arg2[%c0_17, %c0_18] : memref<8x2xf32, #tpu.memory_space<vmem>>, vector<8x2xf32>
      %cst_19 = arith.constant 1.000000e+00 : f32
      %31 = vector.broadcast %cst_19 : f32 to vector<8x2xf32>
      %32 = arith.mulf %30, %31 : vector<8x2xf32>
      %cst_20 = arith.constant dense<0xFF800000> : vector<2xf32>
      %33 = vector.multi_reduction <maximumf>, %32, %cst_20 [0] : vector<8x2xf32> to vector<2xf32>
      %34 = vector.shape_cast %33 : vector<2xf32> to vector<1x2xf32>
      %cst_21 = arith.constant 1.000000e+00 : f32
      %35 = vector.broadcast %cst_21 : f32 to vector<1x2xf32>
      %36 = arith.subf %34, %35 : vector<1x2xf32>
      %cst_22 = arith.constant 1.250000e-01 : f32
      %37 = vector.broadcast %cst_22 : f32 to vector<1x2xf32>
      %38 = arith.subf %34, %37 : vector<1x2xf32>
      %39 = vector.broadcast %36 : vector<1x2xf32> to vector<8x2xf32>
      %40 = arith.subf %32, %39 : vector<8x2xf32>
      %cst_23 = arith.constant 0.000000e+00 : f32
      %41 = vector.broadcast %cst_23 : f32 to vector<8x2xf32>
      %42 = arith.maximumf %40, %41 : vector<8x2xf32>
      %cst_24 = arith.constant dense<0.000000e+00> : vector<2xf32>
      %43 = vector.multi_reduction <add>, %42, %cst_24 [0] : vector<8x2xf32> to vector<2xf32>
      %44 = vector.shape_cast %43 : vector<2xf32> to vector<1x2xf32>
      %cst_25 = arith.constant 1.000000e+00 : f32
      %45 = vector.broadcast %cst_25 : f32 to vector<1x2xf32>
      %46 = arith.subf %44, %45 : vector<1x2xf32>
      %47 = arith.subf %38, %36 : vector<1x2xf32>
      %c0_i32_26 = arith.constant 0 : i32
      %cst_27 = arith.constant 5.000000e-01 : f32
      %48 = vector.broadcast %cst_27 : f32 to vector<1x2xf32>
      %49 = arith.mulf %47, %48 : vector<1x2xf32>
      %50 = arith.addf %36, %49 : vector<1x2xf32>
      %51 = vector.broadcast %50 : vector<1x2xf32> to vector<8x2xf32>
      %52 = arith.subf %32, %51 : vector<8x2xf32>
      %cst_28 = arith.constant 0.000000e+00 : f32
      %53 = vector.broadcast %cst_28 : f32 to vector<8x2xf32>
      %54 = arith.maximumf %52, %53 : vector<8x2xf32>
      %cst_29 = arith.constant dense<0.000000e+00> : vector<2xf32>
      %55 = vector.multi_reduction <add>, %54, %cst_29 [0] : vector<8x2xf32> to vector<2xf32>
      %56 = vector.shape_cast %55 : vector<2xf32> to vector<1x2xf32>
      %cst_30 = arith.constant 1.000000e+00 : f32
      %57 = vector.broadcast %cst_30 : f32 to vector<1x2xf32>
      %58 = arith.subf %56, %57 : vector<1x2xf32>
      %59 = arith.mulf %58, %46 : vector<1x2xf32>
      %cst_31 = arith.constant 0.000000e+00 : f32
      %60 = vector.broadcast %cst_31 : f32 to vector<1x2xf32>
      %61 = arith.cmpf oge, %59, %60 : vector<1x2xf32>
      %62 = arith.select %61, %50, %36 : vector<1x2xi1>, vector<1x2xf32>
      %c1_i32 = arith.constant 1 : i32
      %cst_32 = arith.constant 5.000000e-01 : f32
      %63 = vector.broadcast %cst_32 : f32 to vector<1x2xf32>
      %64 = arith.mulf %49, %63 : vector<1x2xf32>
      %65 = arith.addf %62, %64 : vector<1x2xf32>
      %66 = vector.broadcast %65 : vector<1x2xf32> to vector<8x2xf32>
      %67 = arith.subf %32, %66 : vector<8x2xf32>
      %cst_33 = arith.constant 0.000000e+00 : f32
      %68 = vector.broadcast %cst_33 : f32 to vector<8x2xf32>
      %69 = arith.maximumf %67, %68 : vector<8x2xf32>
      %cst_34 = arith.constant dense<0.000000e+00> : vector<2xf32>
      %70 = vector.multi_reduction <add>, %69, %cst_34 [0] : vector<8x2xf32> to vector<2xf32>
      %71 = vector.shape_cast %70 : vector<2xf32> to vector<1x2xf32>
      %cst_35 = arith.constant 1.000000e+00 : f32
      %72 = vector.broadcast %cst_35 : f32 to vector<1x2xf32>
      %73 = arith.subf %71, %72 : vector<1x2xf32>
      %74 = arith.mulf %73, %46 : vector<1x2xf32>
      %cst_36 = arith.constant 0.000000e+00 : f32
      %75 = vector.broadcast %cst_36 : f32 to vector<1x2xf32>
      %76 = arith.cmpf oge, %74, %75 : vector<1x2xf32>
      %77 = arith.select %76, %65, %62 : vector<1x2xi1>, vector<1x2xf32>
      %c2_i32 = arith.constant 2 : i32
      %cst_37 = arith.constant 5.000000e-01 : f32
      %78 = vector.broadcast %cst_37 : f32 to vector<1x2xf32>
      %79 = arith.mulf %64, %78 : vector<1x2xf32>
      %80 = arith.addf %77, %79 : vector<1x2xf32>
      %81 = vector.broadcast %80 : vector<1x2xf32> to vector<8x2xf32>
      %82 = arith.subf %32, %81 : vector<8x2xf32>
      %cst_38 = arith.constant 0.000000e+00 : f32
      %83 = vector.broadcast %cst_38 : f32 to vector<8x2xf32>
      %84 = arith.maximumf %82, %83 : vector<8x2xf32>
      %cst_39 = arith.constant dense<0.000000e+00> : vector<2xf32>
      %85 = vector.multi_reduction <add>, %84, %cst_39 [0] : vector<8x2xf32> to vector<2xf32>
      %86 = vector.shape_cast %85 : vector<2xf32> to vector<1x2xf32>
      %cst_40 = arith.constant 1.000000e+00 : f32
      %87 = vector.broadcast %cst_40 : f32 to vector<1x2xf32>
      %88 = arith.subf %86, %87 : vector<1x2xf32>
      %89 = arith.mulf %88, %46 : vector<1x2xf32>
      %cst_41 = arith.constant 0.000000e+00 : f32
      %90 = vector.broadcast %cst_41 : f32 to vector<1x2xf32>
      %91 = arith.cmpf oge, %89, %90 : vector<1x2xf32>
      %92 = arith.select %91, %80, %77 : vector<1x2xi1>, vector<1x2xf32>
      %c3_i32 = arith.constant 3 : i32
      %cst_42 = arith.constant 5.000000e-01 : f32
      %93 = vector.broadcast %cst_42 : f32 to vector<1x2xf32>
      %94 = arith.mulf %79, %93 : vector<1x2xf32>
      %95 = arith.addf %92, %94 : vector<1x2xf32>
      %96 = vector.broadcast %95 : vector<1x2xf32> to vector<8x2xf32>
      %97 = arith.subf %32, %96 : vector<8x2xf32>
      %cst_43 = arith.constant 0.000000e+00 : f32
      %98 = vector.broadcast %cst_43 : f32 to vector<8x2xf32>
      %99 = arith.maximumf %97, %98 : vector<8x2xf32>
      %cst_44 = arith.constant dense<0.000000e+00> : vector<2xf32>
      %100 = vector.multi_reduction <add>, %99, %cst_44 [0] : vector<8x2xf32> to vector<2xf32>
      %101 = vector.shape_cast %100 : vector<2xf32> to vector<1x2xf32>
      %cst_45 = arith.constant 1.000000e+00 : f32
      %102 = vector.broadcast %cst_45 : f32 to vector<1x2xf32>
      %103 = arith.subf %101, %102 : vector<1x2xf32>
      %104 = arith.mulf %103, %46 : vector<1x2xf32>
      %cst_46 = arith.constant 0.000000e+00 : f32
      %105 = vector.broadcast %cst_46 : f32 to vector<1x2xf32>
      %106 = arith.cmpf oge, %104, %105 : vector<1x2xf32>
      %107 = arith.select %106, %95, %92 : vector<1x2xi1>, vector<1x2xf32>
      %c4_i32 = arith.constant 4 : i32
      %cst_47 = arith.constant 5.000000e-01 : f32
      %108 = vector.broadcast %cst_47 : f32 to vector<1x2xf32>
      %109 = arith.mulf %94, %108 : vector<1x2xf32>
      %110 = arith.addf %107, %109 : vector<1x2xf32>
      %111 = vector.broadcast %110 : vector<1x2xf32> to vector<8x2xf32>
      %112 = arith.subf %32, %111 : vector<8x2xf32>
      %cst_48 = arith.constant 0.000000e+00 : f32
      %113 = vector.broadcast %cst_48 : f32 to vector<8x2xf32>
      %114 = arith.maximumf %112, %113 : vector<8x2xf32>
      %cst_49 = arith.constant dense<0.000000e+00> : vector<2xf32>
      %115 = vector.multi_reduction <add>, %114, %cst_49 [0] : vector<8x2xf32> to vector<2xf32>
      %116 = vector.shape_cast %115 : vector<2xf32> to vector<1x2xf32>
      %cst_50 = arith.constant 1.000000e+00 : f32
      %117 = vector.broadcast %cst_50 : f32 to vector<1x2xf32>
      %118 = arith.subf %116, %117 : vector<1x2xf32>
      %119 = arith.mulf %118, %46 : vector<1x2xf32>
      %cst_51 = arith.constant 0.000000e+00 : f32
      %120 = vector.broadcast %cst_51 : f32 to vector<1x2xf32>
      %121 = arith.cmpf oge, %119, %120 : vector<1x2xf32>
      %122 = arith.select %121, %110, %107 : vector<1x2xi1>, vector<1x2xf32>
      %c5_i32 = arith.constant 5 : i32
      %cst_52 = arith.constant 5.000000e-01 : f32
      %123 = vector.broadcast %cst_52 : f32 to vector<1x2xf32>
      %124 = arith.mulf %109, %123 : vector<1x2xf32>
      %125 = arith.addf %122, %124 : vector<1x2xf32>
      %126 = vector.broadcast %125 : vector<1x2xf32> to vector<8x2xf32>
      %127 = arith.subf %32, %126 : vector<8x2xf32>
      %cst_53 = arith.constant 0.000000e+00 : f32
      %128 = vector.broadcast %cst_53 : f32 to vector<8x2xf32>
      %129 = arith.maximumf %127, %128 : vector<8x2xf32>
      %cst_54 = arith.constant dense<0.000000e+00> : vector<2xf32>
      %130 = vector.multi_reduction <add>, %129, %cst_54 [0] : vector<8x2xf32> to vector<2xf32>
      %131 = vector.shape_cast %130 : vector<2xf32> to vector<1x2xf32>
      %cst_55 = arith.constant 1.000000e+00 : f32
      %132 = vector.broadcast %cst_55 : f32 to vector<1x2xf32>
      %133 = arith.subf %131, %132 : vector<1x2xf32>
      %134 = arith.mulf %133, %46 : vector<1x2xf32>
      %cst_56 = arith.constant 0.000000e+00 : f32
      %135 = vector.broadcast %cst_56 : f32 to vector<1x2xf32>
      %136 = arith.cmpf oge, %134, %135 : vector<1x2xf32>
      %137 = arith.select %136, %125, %122 : vector<1x2xi1>, vector<1x2xf32>
      %c6_i32 = arith.constant 6 : i32
      %cst_57 = arith.constant 5.000000e-01 : f32
      %138 = vector.broadcast %cst_57 : f32 to vector<1x2xf32>
      %139 = arith.mulf %124, %138 : vector<1x2xf32>
      %140 = arith.addf %137, %139 : vector<1x2xf32>
      %141 = vector.broadcast %140 : vector<1x2xf32> to vector<8x2xf32>
      %142 = arith.subf %32, %141 : vector<8x2xf32>
      %cst_58 = arith.constant 0.000000e+00 : f32
      %143 = vector.broadcast %cst_58 : f32 to vector<8x2xf32>
      %144 = arith.maximumf %142, %143 : vector<8x2xf32>
      %cst_59 = arith.constant dense<0.000000e+00> : vector<2xf32>
      %145 = vector.multi_reduction <add>, %144, %cst_59 [0] : vector<8x2xf32> to vector<2xf32>
      %146 = vector.shape_cast %145 : vector<2xf32> to vector<1x2xf32>
      %cst_60 = arith.constant 1.000000e+00 : f32
      %147 = vector.broadcast %cst_60 : f32 to vector<1x2xf32>
      %148 = arith.subf %146, %147 : vector<1x2xf32>
      %149 = arith.mulf %148, %46 : vector<1x2xf32>
      %cst_61 = arith.constant 0.000000e+00 : f32
      %150 = vector.broadcast %cst_61 : f32 to vector<1x2xf32>
      %151 = arith.cmpf oge, %149, %150 : vector<1x2xf32>
      %152 = arith.select %151, %140, %137 : vector<1x2xi1>, vector<1x2xf32>
      %c7_i32 = arith.constant 7 : i32
      %cst_62 = arith.constant 5.000000e-01 : f32
      %153 = vector.broadcast %cst_62 : f32 to vector<1x2xf32>
      %154 = arith.mulf %139, %153 : vector<1x2xf32>
      %155 = arith.addf %152, %154 : vector<1x2xf32>
      %156 = vector.broadcast %155 : vector<1x2xf32> to vector<8x2xf32>
      %157 = arith.subf %32, %156 : vector<8x2xf32>
      %cst_63 = arith.constant 0.000000e+00 : f32
      %158 = vector.broadcast %cst_63 : f32 to vector<8x2xf32>
      %159 = arith.maximumf %157, %158 : vector<8x2xf32>
      %cst_64 = arith.constant dense<0.000000e+00> : vector<2xf32>
      %160 = vector.multi_reduction <add>, %159, %cst_64 [0] : vector<8x2xf32> to vector<2xf32>
      %161 = vector.shape_cast %160 : vector<2xf32> to vector<1x2xf32>
      %cst_65 = arith.constant 1.000000e+00 : f32
      %162 = vector.broadcast %cst_65 : f32 to vector<1x2xf32>
      %163 = arith.subf %161, %162 : vector<1x2xf32>
      %164 = arith.mulf %163, %46 : vector<1x2xf32>
      %cst_66 = arith.constant 0.000000e+00 : f32
      %165 = vector.broadcast %cst_66 : f32 to vector<1x2xf32>
      %166 = arith.cmpf oge, %164, %165 : vector<1x2xf32>
      %167 = arith.select %166, %155, %152 : vector<1x2xi1>, vector<1x2xf32>
      %c8_i32 = arith.constant 8 : i32
      %cst_67 = arith.constant 5.000000e-01 : f32
      %168 = vector.broadcast %cst_67 : f32 to vector<1x2xf32>
      %169 = arith.mulf %154, %168 : vector<1x2xf32>
      %170 = arith.addf %167, %169 : vector<1x2xf32>
      %171 = vector.broadcast %170 : vector<1x2xf32> to vector<8x2xf32>
      %172 = arith.subf %32, %171 : vector<8x2xf32>
      %cst_68 = arith.constant 0.000000e+00 : f32
      %173 = vector.broadcast %cst_68 : f32 to vector<8x2xf32>
      %174 = arith.maximumf %172, %173 : vector<8x2xf32>
      %cst_69 = arith.constant dense<0.000000e+00> : vector<2xf32>
      %175 = vector.multi_reduction <add>, %174, %cst_69 [0] : vector<8x2xf32> to vector<2xf32>
      %176 = vector.shape_cast %175 : vector<2xf32> to vector<1x2xf32>
      %cst_70 = arith.constant 1.000000e+00 : f32
      %177 = vector.broadcast %cst_70 : f32 to vector<1x2xf32>
      %178 = arith.subf %176, %177 : vector<1x2xf32>
      %179 = arith.mulf %178, %46 : vector<1x2xf32>
      %cst_71 = arith.constant 0.000000e+00 : f32
      %180 = vector.broadcast %cst_71 : f32 to vector<1x2xf32>
      %181 = arith.cmpf oge, %179, %180 : vector<1x2xf32>
      %182 = arith.select %181, %170, %167 : vector<1x2xi1>, vector<1x2xf32>
      %c9_i32 = arith.constant 9 : i32
      %cst_72 = arith.constant 5.000000e-01 : f32
      %183 = vector.broadcast %cst_72 : f32 to vector<1x2xf32>
      %184 = arith.mulf %169, %183 : vector<1x2xf32>
      %185 = arith.addf %182, %184 : vector<1x2xf32>
      %186 = vector.broadcast %185 : vector<1x2xf32> to vector<8x2xf32>
      %187 = arith.subf %32, %186 : vector<8x2xf32>
      %cst_73 = arith.constant 0.000000e+00 : f32
      %188 = vector.broadcast %cst_73 : f32 to vector<8x2xf32>
      %189 = arith.maximumf %187, %188 : vector<8x2xf32>
      %cst_74 = arith.constant dense<0.000000e+00> : vector<2xf32>
      %190 = vector.multi_reduction <add>, %189, %cst_74 [0] : vector<8x2xf32> to vector<2xf32>
      %191 = vector.shape_cast %190 : vector<2xf32> to vector<1x2xf32>
      %cst_75 = arith.constant 1.000000e+00 : f32
      %192 = vector.broadcast %cst_75 : f32 to vector<1x2xf32>
      %193 = arith.subf %191, %192 : vector<1x2xf32>
      %194 = arith.mulf %193, %46 : vector<1x2xf32>
      %cst_76 = arith.constant 0.000000e+00 : f32
      %195 = vector.broadcast %cst_76 : f32 to vector<1x2xf32>
      %196 = arith.cmpf oge, %194, %195 : vector<1x2xf32>
      %197 = arith.select %196, %185, %182 : vector<1x2xi1>, vector<1x2xf32>
      %c10_i32 = arith.constant 10 : i32
      %cst_77 = arith.constant 5.000000e-01 : f32
      %198 = vector.broadcast %cst_77 : f32 to vector<1x2xf32>
      %199 = arith.mulf %184, %198 : vector<1x2xf32>
      %200 = arith.addf %197, %199 : vector<1x2xf32>
      %201 = vector.broadcast %200 : vector<1x2xf32> to vector<8x2xf32>
      %202 = arith.subf %32, %201 : vector<8x2xf32>
      %cst_78 = arith.constant 0.000000e+00 : f32
      %203 = vector.broadcast %cst_78 : f32 to vector<8x2xf32>
      %204 = arith.maximumf %202, %203 : vector<8x2xf32>
      %cst_79 = arith.constant dense<0.000000e+00> : vector<2xf32>
      %205 = vector.multi_reduction <add>, %204, %cst_79 [0] : vector<8x2xf32> to vector<2xf32>
      %206 = vector.shape_cast %205 : vector<2xf32> to vector<1x2xf32>
      %cst_80 = arith.constant 1.000000e+00 : f32
      %207 = vector.broadcast %cst_80 : f32 to vector<1x2xf32>
      %208 = arith.subf %206, %207 : vector<1x2xf32>
      %209 = arith.mulf %208, %46 : vector<1x2xf32>
      %cst_81 = arith.constant 0.000000e+00 : f32
      %210 = vector.broadcast %cst_81 : f32 to vector<1x2xf32>
      %211 = arith.cmpf oge, %209, %210 : vector<1x2xf32>
      %212 = arith.select %211, %200, %197 : vector<1x2xi1>, vector<1x2xf32>
      %c11_i32 = arith.constant 11 : i32
      %cst_82 = arith.constant 5.000000e-01 : f32
      %213 = vector.broadcast %cst_82 : f32 to vector<1x2xf32>
      %214 = arith.mulf %199, %213 : vector<1x2xf32>
      %215 = arith.addf %212, %214 : vector<1x2xf32>
      %216 = vector.broadcast %215 : vector<1x2xf32> to vector<8x2xf32>
      %217 = arith.subf %32, %216 : vector<8x2xf32>
      %cst_83 = arith.constant 0.000000e+00 : f32
      %218 = vector.broadcast %cst_83 : f32 to vector<8x2xf32>
      %219 = arith.maximumf %217, %218 : vector<8x2xf32>
      %cst_84 = arith.constant dense<0.000000e+00> : vector<2xf32>
      %220 = vector.multi_reduction <add>, %219, %cst_84 [0] : vector<8x2xf32> to vector<2xf32>
      %221 = vector.shape_cast %220 : vector<2xf32> to vector<1x2xf32>
      %cst_85 = arith.constant 1.000000e+00 : f32
      %222 = vector.broadcast %cst_85 : f32 to vector<1x2xf32>
      %223 = arith.subf %221, %222 : vector<1x2xf32>
      %224 = arith.mulf %223, %46 : vector<1x2xf32>
      %cst_86 = arith.constant 0.000000e+00 : f32
      %225 = vector.broadcast %cst_86 : f32 to vector<1x2xf32>
      %226 = arith.cmpf oge, %224, %225 : vector<1x2xf32>
      %227 = arith.select %226, %215, %212 : vector<1x2xi1>, vector<1x2xf32>
      %c12_i32 = arith.constant 12 : i32
      %cst_87 = arith.constant 5.000000e-01 : f32
      %228 = vector.broadcast %cst_87 : f32 to vector<1x2xf32>
      %229 = arith.mulf %214, %228 : vector<1x2xf32>
      %230 = arith.addf %227, %229 : vector<1x2xf32>
      %231 = vector.broadcast %230 : vector<1x2xf32> to vector<8x2xf32>
      %232 = arith.subf %32, %231 : vector<8x2xf32>
      %cst_88 = arith.constant 0.000000e+00 : f32
      %233 = vector.broadcast %cst_88 : f32 to vector<8x2xf32>
      %234 = arith.maximumf %232, %233 : vector<8x2xf32>
      %cst_89 = arith.constant dense<0.000000e+00> : vector<2xf32>
      %235 = vector.multi_reduction <add>, %234, %cst_89 [0] : vector<8x2xf32> to vector<2xf32>
      %236 = vector.shape_cast %235 : vector<2xf32> to vector<1x2xf32>
      %cst_90 = arith.constant 1.000000e+00 : f32
      %237 = vector.broadcast %cst_90 : f32 to vector<1x2xf32>
      %238 = arith.subf %236, %237 : vector<1x2xf32>
      %239 = arith.mulf %238, %46 : vector<1x2xf32>
      %cst_91 = arith.constant 0.000000e+00 : f32
      %240 = vector.broadcast %cst_91 : f32 to vector<1x2xf32>
      %241 = arith.cmpf oge, %239, %240 : vector<1x2xf32>
      %242 = arith.select %241, %230, %227 : vector<1x2xi1>, vector<1x2xf32>
      %c13_i32 = arith.constant 13 : i32
      %cst_92 = arith.constant 5.000000e-01 : f32
      %243 = vector.broadcast %cst_92 : f32 to vector<1x2xf32>
      %244 = arith.mulf %229, %243 : vector<1x2xf32>
      %245 = arith.addf %242, %244 : vector<1x2xf32>
      %246 = vector.broadcast %245 : vector<1x2xf32> to vector<8x2xf32>
      %247 = arith.subf %32, %246 : vector<8x2xf32>
      %cst_93 = arith.constant 0.000000e+00 : f32
      %248 = vector.broadcast %cst_93 : f32 to vector<8x2xf32>
      %249 = arith.maximumf %247, %248 : vector<8x2xf32>
      %cst_94 = arith.constant dense<0.000000e+00> : vector<2xf32>
      %250 = vector.multi_reduction <add>, %249, %cst_94 [0] : vector<8x2xf32> to vector<2xf32>
      %251 = vector.shape_cast %250 : vector<2xf32> to vector<1x2xf32>
      %cst_95 = arith.constant 1.000000e+00 : f32
      %252 = vector.broadcast %cst_95 : f32 to vector<1x2xf32>
      %253 = arith.subf %251, %252 : vector<1x2xf32>
      %254 = arith.mulf %253, %46 : vector<1x2xf32>
      %cst_96 = arith.constant 0.000000e+00 : f32
      %255 = vector.broadcast %cst_96 : f32 to vector<1x2xf32>
      %256 = arith.cmpf oge, %254, %255 : vector<1x2xf32>
      %257 = arith.select %256, %245, %242 : vector<1x2xi1>, vector<1x2xf32>
      %c14_i32 = arith.constant 14 : i32
      %cst_97 = arith.constant 5.000000e-01 : f32
      %258 = vector.broadcast %cst_97 : f32 to vector<1x2xf32>
      %259 = arith.mulf %244, %258 : vector<1x2xf32>
      %260 = arith.addf %257, %259 : vector<1x2xf32>
      %261 = vector.broadcast %260 : vector<1x2xf32> to vector<8x2xf32>
      %262 = arith.subf %32, %261 : vector<8x2xf32>
      %cst_98 = arith.constant 0.000000e+00 : f32
      %263 = vector.broadcast %cst_98 : f32 to vector<8x2xf32>
      %264 = arith.maximumf %262, %263 : vector<8x2xf32>
      %cst_99 = arith.constant dense<0.000000e+00> : vector<2xf32>
      %265 = vector.multi_reduction <add>, %264, %cst_99 [0] : vector<8x2xf32> to vector<2xf32>
      %266 = vector.shape_cast %265 : vector<2xf32> to vector<1x2xf32>
      %cst_100 = arith.constant 1.000000e+00 : f32
      %267 = vector.broadcast %cst_100 : f32 to vector<1x2xf32>
      %268 = arith.subf %266, %267 : vector<1x2xf32>
      %269 = arith.mulf %268, %46 : vector<1x2xf32>
      %cst_101 = arith.constant 0.000000e+00 : f32
      %270 = vector.broadcast %cst_101 : f32 to vector<1x2xf32>
      %271 = arith.cmpf oge, %269, %270 : vector<1x2xf32>
      %272 = arith.select %271, %260, %257 : vector<1x2xi1>, vector<1x2xf32>
      %c15_i32 = arith.constant 15 : i32
      %cst_102 = arith.constant 5.000000e-01 : f32
      %273 = vector.broadcast %cst_102 : f32 to vector<1x2xf32>
      %274 = arith.mulf %259, %273 : vector<1x2xf32>
      %275 = arith.addf %272, %274 : vector<1x2xf32>
      %276 = vector.broadcast %275 : vector<1x2xf32> to vector<8x2xf32>
      %277 = arith.subf %32, %276 : vector<8x2xf32>
      %cst_103 = arith.constant 0.000000e+00 : f32
      %278 = vector.broadcast %cst_103 : f32 to vector<8x2xf32>
      %279 = arith.maximumf %277, %278 : vector<8x2xf32>
      %cst_104 = arith.constant dense<0.000000e+00> : vector<2xf32>
      %280 = vector.multi_reduction <add>, %279, %cst_104 [0] : vector<8x2xf32> to vector<2xf32>
      %281 = vector.shape_cast %280 : vector<2xf32> to vector<1x2xf32>
      %cst_105 = arith.constant 1.000000e+00 : f32
      %282 = vector.broadcast %cst_105 : f32 to vector<1x2xf32>
      %283 = arith.subf %281, %282 : vector<1x2xf32>
      %284 = arith.mulf %283, %46 : vector<1x2xf32>
      %cst_106 = arith.constant 0.000000e+00 : f32
      %285 = vector.broadcast %cst_106 : f32 to vector<1x2xf32>
      %286 = arith.cmpf oge, %284, %285 : vector<1x2xf32>
      %287 = arith.select %286, %275, %272 : vector<1x2xi1>, vector<1x2xf32>
      %c16_i32 = arith.constant 16 : i32
      %cst_107 = arith.constant 5.000000e-01 : f32
      %288 = vector.broadcast %cst_107 : f32 to vector<1x2xf32>
      %289 = arith.mulf %274, %288 : vector<1x2xf32>
      %290 = arith.addf %287, %289 : vector<1x2xf32>
      %291 = vector.broadcast %290 : vector<1x2xf32> to vector<8x2xf32>
      %292 = arith.subf %32, %291 : vector<8x2xf32>
      %cst_108 = arith.constant 0.000000e+00 : f32
      %293 = vector.broadcast %cst_108 : f32 to vector<8x2xf32>
      %294 = arith.maximumf %292, %293 : vector<8x2xf32>
      %cst_109 = arith.constant dense<0.000000e+00> : vector<2xf32>
      %295 = vector.multi_reduction <add>, %294, %cst_109 [0] : vector<8x2xf32> to vector<2xf32>
      %296 = vector.shape_cast %295 : vector<2xf32> to vector<1x2xf32>
      %cst_110 = arith.constant 1.000000e+00 : f32
      %297 = vector.broadcast %cst_110 : f32 to vector<1x2xf32>
      %298 = arith.subf %296, %297 : vector<1x2xf32>
      %299 = arith.mulf %298, %46 : vector<1x2xf32>
      %cst_111 = arith.constant 0.000000e+00 : f32
      %300 = vector.broadcast %cst_111 : f32 to vector<1x2xf32>
      %301 = arith.cmpf oge, %299, %300 : vector<1x2xf32>
      %302 = arith.select %301, %290, %287 : vector<1x2xi1>, vector<1x2xf32>
      %c17_i32 = arith.constant 17 : i32
      %cst_112 = arith.constant 5.000000e-01 : f32
      %303 = vector.broadcast %cst_112 : f32 to vector<1x2xf32>
      %304 = arith.mulf %289, %303 : vector<1x2xf32>
      %305 = arith.addf %302, %304 : vector<1x2xf32>
      %306 = vector.broadcast %305 : vector<1x2xf32> to vector<8x2xf32>
      %307 = arith.subf %32, %306 : vector<8x2xf32>
      %cst_113 = arith.constant 0.000000e+00 : f32
      %308 = vector.broadcast %cst_113 : f32 to vector<8x2xf32>
      %309 = arith.maximumf %307, %308 : vector<8x2xf32>
      %cst_114 = arith.constant dense<0.000000e+00> : vector<2xf32>
      %310 = vector.multi_reduction <add>, %309, %cst_114 [0] : vector<8x2xf32> to vector<2xf32>
      %311 = vector.shape_cast %310 : vector<2xf32> to vector<1x2xf32>
      %cst_115 = arith.constant 1.000000e+00 : f32
      %312 = vector.broadcast %cst_115 : f32 to vector<1x2xf32>
      %313 = arith.subf %311, %312 : vector<1x2xf32>
      %314 = arith.mulf %313, %46 : vector<1x2xf32>
      %cst_116 = arith.constant 0.000000e+00 : f32
      %315 = vector.broadcast %cst_116 : f32 to vector<1x2xf32>
      %316 = arith.cmpf oge, %314, %315 : vector<1x2xf32>
      %317 = arith.select %316, %305, %302 : vector<1x2xi1>, vector<1x2xf32>
      %c18_i32 = arith.constant 18 : i32
      %cst_117 = arith.constant 5.000000e-01 : f32
      %318 = vector.broadcast %cst_117 : f32 to vector<1x2xf32>
      %319 = arith.mulf %304, %318 : vector<1x2xf32>
      %320 = arith.addf %317, %319 : vector<1x2xf32>
      %321 = vector.broadcast %320 : vector<1x2xf32> to vector<8x2xf32>
      %322 = arith.subf %32, %321 : vector<8x2xf32>
      %cst_118 = arith.constant 0.000000e+00 : f32
      %323 = vector.broadcast %cst_118 : f32 to vector<8x2xf32>
      %324 = arith.maximumf %322, %323 : vector<8x2xf32>
      %cst_119 = arith.constant dense<0.000000e+00> : vector<2xf32>
      %325 = vector.multi_reduction <add>, %324, %cst_119 [0] : vector<8x2xf32> to vector<2xf32>
      %326 = vector.shape_cast %325 : vector<2xf32> to vector<1x2xf32>
      %cst_120 = arith.constant 1.000000e+00 : f32
      %327 = vector.broadcast %cst_120 : f32 to vector<1x2xf32>
      %328 = arith.subf %326, %327 : vector<1x2xf32>
      %329 = arith.mulf %328, %46 : vector<1x2xf32>
      %cst_121 = arith.constant 0.000000e+00 : f32
      %330 = vector.broadcast %cst_121 : f32 to vector<1x2xf32>
      %331 = arith.cmpf oge, %329, %330 : vector<1x2xf32>
      %332 = arith.select %331, %320, %317 : vector<1x2xi1>, vector<1x2xf32>
      %c19_i32 = arith.constant 19 : i32
      %cst_122 = arith.constant 5.000000e-01 : f32
      %333 = vector.broadcast %cst_122 : f32 to vector<1x2xf32>
      %334 = arith.mulf %319, %333 : vector<1x2xf32>
      %335 = arith.addf %332, %334 : vector<1x2xf32>
      %336 = vector.broadcast %335 : vector<1x2xf32> to vector<8x2xf32>
      %337 = arith.subf %32, %336 : vector<8x2xf32>
      %cst_123 = arith.constant 0.000000e+00 : f32
      %338 = vector.broadcast %cst_123 : f32 to vector<8x2xf32>
      %339 = arith.maximumf %337, %338 : vector<8x2xf32>
      %cst_124 = arith.constant dense<0.000000e+00> : vector<2xf32>
      %340 = vector.multi_reduction <add>, %339, %cst_124 [0] : vector<8x2xf32> to vector<2xf32>
      %341 = vector.shape_cast %340 : vector<2xf32> to vector<1x2xf32>
      %cst_125 = arith.constant 1.000000e+00 : f32
      %342 = vector.broadcast %cst_125 : f32 to vector<1x2xf32>
      %343 = arith.subf %341, %342 : vector<1x2xf32>
      %344 = arith.mulf %343, %46 : vector<1x2xf32>
      %cst_126 = arith.constant 0.000000e+00 : f32
      %345 = vector.broadcast %cst_126 : f32 to vector<1x2xf32>
      %346 = arith.cmpf oge, %344, %345 : vector<1x2xf32>
      %347 = arith.select %346, %335, %332 : vector<1x2xi1>, vector<1x2xf32>
      %c20_i32 = arith.constant 20 : i32
      %cst_127 = arith.constant 5.000000e-01 : f32
      %348 = vector.broadcast %cst_127 : f32 to vector<1x2xf32>
      %349 = arith.mulf %334, %348 : vector<1x2xf32>
      %350 = arith.addf %347, %349 : vector<1x2xf32>
      %351 = vector.broadcast %350 : vector<1x2xf32> to vector<8x2xf32>
      %352 = arith.subf %32, %351 : vector<8x2xf32>
      %cst_128 = arith.constant 0.000000e+00 : f32
      %353 = vector.broadcast %cst_128 : f32 to vector<8x2xf32>
      %354 = arith.maximumf %352, %353 : vector<8x2xf32>
      %cst_129 = arith.constant dense<0.000000e+00> : vector<2xf32>
      %355 = vector.multi_reduction <add>, %354, %cst_129 [0] : vector<8x2xf32> to vector<2xf32>
      %356 = vector.shape_cast %355 : vector<2xf32> to vector<1x2xf32>
      %cst_130 = arith.constant 1.000000e+00 : f32
      %357 = vector.broadcast %cst_130 : f32 to vector<1x2xf32>
      %358 = arith.subf %356, %357 : vector<1x2xf32>
      %359 = arith.mulf %358, %46 : vector<1x2xf32>
      %cst_131 = arith.constant 0.000000e+00 : f32
      %360 = vector.broadcast %cst_131 : f32 to vector<1x2xf32>
      %361 = arith.cmpf oge, %359, %360 : vector<1x2xf32>
      %362 = arith.select %361, %350, %347 : vector<1x2xi1>, vector<1x2xf32>
      %c21_i32 = arith.constant 21 : i32
      %cst_132 = arith.constant 5.000000e-01 : f32
      %363 = vector.broadcast %cst_132 : f32 to vector<1x2xf32>
      %364 = arith.mulf %349, %363 : vector<1x2xf32>
      %365 = arith.addf %362, %364 : vector<1x2xf32>
      %366 = vector.broadcast %365 : vector<1x2xf32> to vector<8x2xf32>
      %367 = arith.subf %32, %366 : vector<8x2xf32>
      %cst_133 = arith.constant 0.000000e+00 : f32
      %368 = vector.broadcast %cst_133 : f32 to vector<8x2xf32>
      %369 = arith.maximumf %367, %368 : vector<8x2xf32>
      %cst_134 = arith.constant dense<0.000000e+00> : vector<2xf32>
      %370 = vector.multi_reduction <add>, %369, %cst_134 [0] : vector<8x2xf32> to vector<2xf32>
      %371 = vector.shape_cast %370 : vector<2xf32> to vector<1x2xf32>
      %cst_135 = arith.constant 1.000000e+00 : f32
      %372 = vector.broadcast %cst_135 : f32 to vector<1x2xf32>
      %373 = arith.subf %371, %372 : vector<1x2xf32>
      %374 = arith.mulf %373, %46 : vector<1x2xf32>
      %cst_136 = arith.constant 0.000000e+00 : f32
      %375 = vector.broadcast %cst_136 : f32 to vector<1x2xf32>
      %376 = arith.cmpf oge, %374, %375 : vector<1x2xf32>
      %377 = arith.select %376, %365, %362 : vector<1x2xi1>, vector<1x2xf32>
      %c22_i32 = arith.constant 22 : i32
      %cst_137 = arith.constant 5.000000e-01 : f32
      %378 = vector.broadcast %cst_137 : f32 to vector<1x2xf32>
      %379 = arith.mulf %364, %378 : vector<1x2xf32>
      %380 = arith.addf %377, %379 : vector<1x2xf32>
      %381 = vector.broadcast %380 : vector<1x2xf32> to vector<8x2xf32>
      %382 = arith.subf %32, %381 : vector<8x2xf32>
      %cst_138 = arith.constant 0.000000e+00 : f32
      %383 = vector.broadcast %cst_138 : f32 to vector<8x2xf32>
      %384 = arith.maximumf %382, %383 : vector<8x2xf32>
      %cst_139 = arith.constant dense<0.000000e+00> : vector<2xf32>
      %385 = vector.multi_reduction <add>, %384, %cst_139 [0] : vector<8x2xf32> to vector<2xf32>
      %386 = vector.shape_cast %385 : vector<2xf32> to vector<1x2xf32>
      %cst_140 = arith.constant 1.000000e+00 : f32
      %387 = vector.broadcast %cst_140 : f32 to vector<1x2xf32>
      %388 = arith.subf %386, %387 : vector<1x2xf32>
      %389 = arith.mulf %388, %46 : vector<1x2xf32>
      %cst_141 = arith.constant 0.000000e+00 : f32
      %390 = vector.broadcast %cst_141 : f32 to vector<1x2xf32>
      %391 = arith.cmpf oge, %389, %390 : vector<1x2xf32>
      %392 = arith.select %391, %380, %377 : vector<1x2xi1>, vector<1x2xf32>
      %c23_i32 = arith.constant 23 : i32
      %cst_142 = arith.constant 5.000000e-01 : f32
      %393 = vector.broadcast %cst_142 : f32 to vector<1x2xf32>
      %394 = arith.mulf %379, %393 : vector<1x2xf32>
      %395 = arith.addf %392, %394 : vector<1x2xf32>
      %396 = vector.broadcast %395 : vector<1x2xf32> to vector<8x2xf32>
      %397 = arith.subf %32, %396 : vector<8x2xf32>
      %cst_143 = arith.constant 0.000000e+00 : f32
      %398 = vector.broadcast %cst_143 : f32 to vector<8x2xf32>
      %399 = arith.maximumf %397, %398 : vector<8x2xf32>
      %cst_144 = arith.constant dense<0.000000e+00> : vector<2xf32>
      %400 = vector.multi_reduction <add>, %399, %cst_144 [0] : vector<8x2xf32> to vector<2xf32>
      %401 = vector.shape_cast %400 : vector<2xf32> to vector<1x2xf32>
      %cst_145 = arith.constant 1.000000e+00 : f32
      %402 = vector.broadcast %cst_145 : f32 to vector<1x2xf32>
      %403 = arith.subf %401, %402 : vector<1x2xf32>
      %404 = arith.mulf %403, %46 : vector<1x2xf32>
      %cst_146 = arith.constant 0.000000e+00 : f32
      %405 = vector.broadcast %cst_146 : f32 to vector<1x2xf32>
      %406 = arith.cmpf oge, %404, %405 : vector<1x2xf32>
      %407 = arith.select %406, %395, %392 : vector<1x2xi1>, vector<1x2xf32>
      %c24_i32 = arith.constant 24 : i32
      %cst_147 = arith.constant 5.000000e-01 : f32
      %408 = vector.broadcast %cst_147 : f32 to vector<1x2xf32>
      %409 = arith.mulf %394, %408 : vector<1x2xf32>
      %410 = arith.addf %407, %409 : vector<1x2xf32>
      %411 = vector.broadcast %410 : vector<1x2xf32> to vector<8x2xf32>
      %412 = arith.subf %32, %411 : vector<8x2xf32>
      %cst_148 = arith.constant 0.000000e+00 : f32
      %413 = vector.broadcast %cst_148 : f32 to vector<8x2xf32>
      %414 = arith.maximumf %412, %413 : vector<8x2xf32>
      %cst_149 = arith.constant dense<0.000000e+00> : vector<2xf32>
      %415 = vector.multi_reduction <add>, %414, %cst_149 [0] : vector<8x2xf32> to vector<2xf32>
      %416 = vector.shape_cast %415 : vector<2xf32> to vector<1x2xf32>
      %cst_150 = arith.constant 1.000000e+00 : f32
      %417 = vector.broadcast %cst_150 : f32 to vector<1x2xf32>
      %418 = arith.subf %416, %417 : vector<1x2xf32>
      %419 = arith.mulf %418, %46 : vector<1x2xf32>
      %cst_151 = arith.constant 0.000000e+00 : f32
      %420 = vector.broadcast %cst_151 : f32 to vector<1x2xf32>
      %421 = arith.cmpf oge, %419, %420 : vector<1x2xf32>
      %422 = arith.select %421, %410, %407 : vector<1x2xi1>, vector<1x2xf32>
      %c25_i32 = arith.constant 25 : i32
      %cst_152 = arith.constant 5.000000e-01 : f32
      %423 = vector.broadcast %cst_152 : f32 to vector<1x2xf32>
      %424 = arith.mulf %409, %423 : vector<1x2xf32>
      %425 = arith.addf %422, %424 : vector<1x2xf32>
      %426 = vector.broadcast %425 : vector<1x2xf32> to vector<8x2xf32>
      %427 = arith.subf %32, %426 : vector<8x2xf32>
      %cst_153 = arith.constant 0.000000e+00 : f32
      %428 = vector.broadcast %cst_153 : f32 to vector<8x2xf32>
      %429 = arith.maximumf %427, %428 : vector<8x2xf32>
      %cst_154 = arith.constant dense<0.000000e+00> : vector<2xf32>
      %430 = vector.multi_reduction <add>, %429, %cst_154 [0] : vector<8x2xf32> to vector<2xf32>
      %431 = vector.shape_cast %430 : vector<2xf32> to vector<1x2xf32>
      %cst_155 = arith.constant 1.000000e+00 : f32
      %432 = vector.broadcast %cst_155 : f32 to vector<1x2xf32>
      %433 = arith.subf %431, %432 : vector<1x2xf32>
      %434 = arith.mulf %433, %46 : vector<1x2xf32>
      %cst_156 = arith.constant 0.000000e+00 : f32
      %435 = vector.broadcast %cst_156 : f32 to vector<1x2xf32>
      %436 = arith.cmpf oge, %434, %435 : vector<1x2xf32>
      %437 = arith.select %436, %425, %422 : vector<1x2xi1>, vector<1x2xf32>
      %c26_i32 = arith.constant 26 : i32
      %cst_157 = arith.constant 5.000000e-01 : f32
      %438 = vector.broadcast %cst_157 : f32 to vector<1x2xf32>
      %439 = arith.mulf %424, %438 : vector<1x2xf32>
      %440 = arith.addf %437, %439 : vector<1x2xf32>
      %441 = vector.broadcast %440 : vector<1x2xf32> to vector<8x2xf32>
      %442 = arith.subf %32, %441 : vector<8x2xf32>
      %cst_158 = arith.constant 0.000000e+00 : f32
      %443 = vector.broadcast %cst_158 : f32 to vector<8x2xf32>
      %444 = arith.maximumf %442, %443 : vector<8x2xf32>
      %cst_159 = arith.constant dense<0.000000e+00> : vector<2xf32>
      %445 = vector.multi_reduction <add>, %444, %cst_159 [0] : vector<8x2xf32> to vector<2xf32>
      %446 = vector.shape_cast %445 : vector<2xf32> to vector<1x2xf32>
      %cst_160 = arith.constant 1.000000e+00 : f32
      %447 = vector.broadcast %cst_160 : f32 to vector<1x2xf32>
      %448 = arith.subf %446, %447 : vector<1x2xf32>
      %449 = arith.mulf %448, %46 : vector<1x2xf32>
      %cst_161 = arith.constant 0.000000e+00 : f32
      %450 = vector.broadcast %cst_161 : f32 to vector<1x2xf32>
      %451 = arith.cmpf oge, %449, %450 : vector<1x2xf32>
      %452 = arith.select %451, %440, %437 : vector<1x2xi1>, vector<1x2xf32>
      %c27_i32 = arith.constant 27 : i32
      %cst_162 = arith.constant 5.000000e-01 : f32
      %453 = vector.broadcast %cst_162 : f32 to vector<1x2xf32>
      %454 = arith.mulf %439, %453 : vector<1x2xf32>
      %455 = arith.addf %452, %454 : vector<1x2xf32>
      %456 = vector.broadcast %455 : vector<1x2xf32> to vector<8x2xf32>
      %457 = arith.subf %32, %456 : vector<8x2xf32>
      %cst_163 = arith.constant 0.000000e+00 : f32
      %458 = vector.broadcast %cst_163 : f32 to vector<8x2xf32>
      %459 = arith.maximumf %457, %458 : vector<8x2xf32>
      %cst_164 = arith.constant dense<0.000000e+00> : vector<2xf32>
      %460 = vector.multi_reduction <add>, %459, %cst_164 [0] : vector<8x2xf32> to vector<2xf32>
      %461 = vector.shape_cast %460 : vector<2xf32> to vector<1x2xf32>
      %cst_165 = arith.constant 1.000000e+00 : f32
      %462 = vector.broadcast %cst_165 : f32 to vector<1x2xf32>
      %463 = arith.subf %461, %462 : vector<1x2xf32>
      %464 = arith.mulf %463, %46 : vector<1x2xf32>
      %cst_166 = arith.constant 0.000000e+00 : f32
      %465 = vector.broadcast %cst_166 : f32 to vector<1x2xf32>
      %466 = arith.cmpf oge, %464, %465 : vector<1x2xf32>
      %467 = arith.select %466, %455, %452 : vector<1x2xi1>, vector<1x2xf32>
      %c28_i32 = arith.constant 28 : i32
      %cst_167 = arith.constant 5.000000e-01 : f32
      %468 = vector.broadcast %cst_167 : f32 to vector<1x2xf32>
      %469 = arith.mulf %454, %468 : vector<1x2xf32>
      %470 = arith.addf %467, %469 : vector<1x2xf32>
      %471 = vector.broadcast %470 : vector<1x2xf32> to vector<8x2xf32>
      %472 = arith.subf %32, %471 : vector<8x2xf32>
      %cst_168 = arith.constant 0.000000e+00 : f32
      %473 = vector.broadcast %cst_168 : f32 to vector<8x2xf32>
      %474 = arith.maximumf %472, %473 : vector<8x2xf32>
      %cst_169 = arith.constant dense<0.000000e+00> : vector<2xf32>
      %475 = vector.multi_reduction <add>, %474, %cst_169 [0] : vector<8x2xf32> to vector<2xf32>
      %476 = vector.shape_cast %475 : vector<2xf32> to vector<1x2xf32>
      %cst_170 = arith.constant 1.000000e+00 : f32
      %477 = vector.broadcast %cst_170 : f32 to vector<1x2xf32>
      %478 = arith.subf %476, %477 : vector<1x2xf32>
      %479 = arith.mulf %478, %46 : vector<1x2xf32>
      %cst_171 = arith.constant 0.000000e+00 : f32
      %480 = vector.broadcast %cst_171 : f32 to vector<1x2xf32>
      %481 = arith.cmpf oge, %479, %480 : vector<1x2xf32>
      %482 = arith.select %481, %470, %467 : vector<1x2xi1>, vector<1x2xf32>
      %c29_i32 = arith.constant 29 : i32
      %cst_172 = arith.constant 5.000000e-01 : f32
      %483 = vector.broadcast %cst_172 : f32 to vector<1x2xf32>
      %484 = arith.mulf %469, %483 : vector<1x2xf32>
      %485 = arith.addf %482, %484 : vector<1x2xf32>
      %486 = vector.broadcast %485 : vector<1x2xf32> to vector<8x2xf32>
      %487 = arith.subf %32, %486 : vector<8x2xf32>
      %cst_173 = arith.constant 0.000000e+00 : f32
      %488 = vector.broadcast %cst_173 : f32 to vector<8x2xf32>
      %489 = arith.maximumf %487, %488 : vector<8x2xf32>
      %cst_174 = arith.constant dense<0.000000e+00> : vector<2xf32>
      %490 = vector.multi_reduction <add>, %489, %cst_174 [0] : vector<8x2xf32> to vector<2xf32>
      %491 = vector.shape_cast %490 : vector<2xf32> to vector<1x2xf32>
      %cst_175 = arith.constant 1.000000e+00 : f32
      %492 = vector.broadcast %cst_175 : f32 to vector<1x2xf32>
      %493 = arith.subf %491, %492 : vector<1x2xf32>
      %494 = arith.mulf %493, %46 : vector<1x2xf32>
      %cst_176 = arith.constant 0.000000e+00 : f32
      %495 = vector.broadcast %cst_176 : f32 to vector<1x2xf32>
      %496 = arith.cmpf oge, %494, %495 : vector<1x2xf32>
      %497 = arith.select %496, %485, %482 : vector<1x2xi1>, vector<1x2xf32>
      %498 = vector.broadcast %485 : vector<1x2xf32> to vector<8x2xf32>
      %499 = arith.subf %32, %498 : vector<8x2xf32>
      %cst_177 = arith.constant 0.000000e+00 : f32
      %500 = vector.broadcast %cst_177 : f32 to vector<8x2xf32>
      %501 = arith.maximumf %499, %500 : vector<8x2xf32>
      %cst_178 = arith.constant dense<0.000000e+00> : vector<2xf32>
      %502 = vector.multi_reduction <add>, %501, %cst_178 [0] : vector<8x2xf32> to vector<2xf32>
      %503 = vector.shape_cast %502 : vector<2xf32> to vector<1x2xf32>
      %cst_179 = arith.constant 1.000000e-30 : f32
      %504 = vector.broadcast %cst_179 : f32 to vector<1x2xf32>
      %505 = arith.maximumf %503, %504 : vector<1x2xf32>
      %506 = vector.broadcast %505 : vector<1x2xf32> to vector<8x2xf32>
      %507 = arith.divf %501, %506 : vector<8x2xf32>
      %c0_180 = arith.constant 0 : index
      %c0_181 = arith.constant 0 : index
      %508 = vector.load %arg7[%c0_180, %c0_181] : memref<8x2xf32, #tpu.memory_space<vmem>>, vector<8x2xf32>
      tpu.vector_store %arg7[%c0_180, %c0_181], %507 {strides = array<i32>} : memref<8x2xf32, #tpu.memory_space<vmem>>, vector<8x2xf32>,
      %cst_182 = arith.constant 0.000000e+00 : f32
      %509 = vector.broadcast %cst_182 : f32 to vector<2x32xf32>
      %c0_183 = arith.constant 0 : index
      %c0_184 = arith.constant 0 : index
      %510 = vector.load %arg8[%c0_183, %c0_184] : memref<2x32xf32, #tpu.memory_space<vmem>>, vector<2x32xf32>
      tpu.vector_store %arg8[%c0_183, %c0_184], %509 {strides = array<i32>} : memref<2x32xf32, #tpu.memory_space<vmem>>, vector<2x32xf32>,
    } else {
    }
    %c0 = arith.constant 0 : index
    %c0_1 = arith.constant 0 : index
    %c0_2 = arith.constant 0 : index
    %3 = vector.load %arg3[%c0, %c0_1, %c0_2] : memref<2x8x32xf32, #tpu.memory_space<vmem>>, vector<2x8x32xf32>
    %4 = vector.shape_cast %3 : vector<2x8x32xf32> to vector<16x32xf32>
    %5 = arith.truncf %4 : vector<16x32xf32> to vector<16x32xbf16>
    %c0_3 = arith.constant 0 : index
    %c0_4 = arith.constant 0 : index
    %6 = vector.load %arg4[%c0_3, %c0_4] : memref<32x32xbf16, #tpu.memory_space<vmem>>, vector<32x32xbf16>
    %cst = arith.constant dense<0.000000e+00> : vector<16x32xf32>
    %7 = tpu.matmul %5, %6, %cst {dimension_numbers = #tpu.dot_dimension_numbers<[1], [0], [0], [1], [0, 0, 1, 1], [], []>} : vector<16x32xbf16>, vector<32x32xbf16>, vector<16x32xf32> -> vector<16x32xf32>
    %c0_5 = arith.constant 0 : index
    %c0_6 = arith.constant 0 : index
    %8 = vector.load %arg5[%c0_5, %c0_6] : memref<1x32xf32, #tpu.memory_space<vmem>>, vector<1x32xf32>
    %9 = vector.broadcast %8 : vector<1x32xf32> to vector<16x32xf32>
    %10 = arith.addf %7, %9 : vector<16x32xf32>
    %11 = arith.negf %10 : vector<16x32xf32>
    %12 = math.exp %11 : vector<16x32xf32>
    %cst_7 = arith.constant 1.000000e+00 : f32
    %13 = vector.broadcast %cst_7 : f32 to vector<16x32xf32>
    %14 = arith.addf %13, %12 : vector<16x32xf32>
    %15 = arith.divf %13, %14 : vector<16x32xf32>
    %16 = vector.shape_cast %15 : vector<16x32xf32> to vector<2x8x32xf32>
    %c0_8 = arith.constant 0 : index
    %c0_9 = arith.constant 0 : index
    %17 = vector.load %arg7[%c0_8, %c0_9] : memref<8x2xf32, #tpu.memory_space<vmem>>, vector<8x2xf32>
    %18 = tpu.transpose %17, [1, 0] : vector<8x2xf32> -> vector<2x8xf32>
    %19 = vector.shape_cast %18 : vector<2x8xf32> to vector<2x8x1xf32>
    %c0_10 = arith.constant 0 : index
    %c0_11 = arith.constant 0 : index
    %20 = vector.load %arg8[%c0_10, %c0_11] : memref<2x32xf32, #tpu.memory_space<vmem>>, vector<2x32xf32>
    %21 = vector.broadcast %19 : vector<2x8x1xf32> to vector<2x8x32xf32>
    %22 = arith.mulf %21, %3 : vector<2x8x32xf32>
    %23 = arith.mulf %22, %16 : vector<2x8x32xf32>
    %cst_12 = arith.constant dense<0.000000e+00> : vector<2x32xf32>
    %24 = vector.multi_reduction <add>, %23, %cst_12 [1] : vector<2x8x32xf32> to vector<2x32xf32>
    %25 = arith.addf %20, %24 : vector<2x32xf32>
    %c0_13 = arith.constant 0 : index
    %c0_14 = arith.constant 0 : index
    %26 = vector.load %arg8[%c0_13, %c0_14] : memref<2x32xf32, #tpu.memory_space<vmem>>, vector<2x32xf32>
    tpu.vector_store %arg8[%c0_13, %c0_14], %25 {strides = array<i32>} : memref<2x32xf32, #tpu.memory_space<vmem>>, vector<2x32xf32>,
    %c0_i32_15 = arith.constant 0 : i32
    %27 = arith.cmpi eq, %arg1, %c0_i32_15 : i32
    %28 = arith.extui %27 : i1 to i32
    %c0_i32_16 = arith.constant 0 : i32
    %29 = arith.cmpi ne, %28, %c0_i32_16 : i32
    scf.if %29 {
      %c0_17 = arith.constant 0 : index
      %c0_18 = arith.constant 0 : index
      %30 = vector.load %arg8[%c0_17, %c0_18] : memref<2x32xf32, #tpu.memory_space<vmem>>, vector<2x32xf32>
      %c0_19 = arith.constant 0 : index
      %c0_20 = arith.constant 0 : index
      %31 = vector.load %arg6[%c0_19, %c0_20] : memref<2x32xf32, #tpu.memory_space<vmem>>, vector<2x32xf32>
      tpu.vector_store %arg6[%c0_19, %c0_20], %30 {strides = array<i32>} : memref<2x32xf32, #tpu.memory_space<vmem>>, vector<2x32xf32>,
    } else {
    }
    return
  }
  func.func @transform_0(%arg0: i32, %arg1: i32) -> (i32, i32) {
    %c0_i32 = arith.constant 0 : i32
    %c0_i32_0 = arith.constant 0 : i32
    return %c0_i32, %arg0 : i32, i32
  }
  func.func @transform_1(%arg0: i32, %arg1: i32) -> (i32, i32, i32) {
    %c0_i32 = arith.constant 0 : i32
    %c0_i32_0 = arith.constant 0 : i32
    return %arg0, %arg1, %c0_i32 : i32, i32, i32
  }
  func.func @transform_2(%arg0: i32, %arg1: i32) -> (i32, i32) {
    %c0_i32 = arith.constant 0 : i32
    %c0_i32_0 = arith.constant 0 : i32
    %c0_i32_1 = arith.constant 0 : i32
    return %c0_i32, %c0_i32_0 : i32, i32
  }
  func.func @transform_3(%arg0: i32, %arg1: i32) -> (i32, i32) {
    %c0_i32 = arith.constant 0 : i32
    %c0_i32_0 = arith.constant 0 : i32
    %c0_i32_1 = arith.constant 0 : i32
    return %c0_i32, %c0_i32_0 : i32, i32
  }
  func.func @transform_4(%arg0: i32, %arg1: i32) -> (i32, i32) {
    %c0_i32 = arith.constant 0 : i32
    %c0_i32_0 = arith.constant 0 : i32
    return %arg0, %c0_i32 : i32, i32
  }
}

</mosaic_0001>

<llo_original>
// kernel: tpu_custom_call.1
$region0: #{tpu_custom_call.1}
  #allocation0 [shape = 'u32[]', space=smem, size = 0x4, offset = 0x4, fixed_abs, tag = 'smem constant byte address 0x4 - core index']
  #allocation1 [shape = 'u32[144,128]{1,0:T(1,128)}', space=vmem, size = 0x12000, scoped, tag = 'internal scratch']
  #allocation2 [shape = 'f32[8,2]{1,0:T(8,128)}', space=vmem, size = 0x1000, scoped, tag = 'scratch operand']
  #allocation3 [shape = 'f32[2,32]{1,0:T(2,128)}', space=vmem, size = 0x400, scoped, tag = 'scratch operand']
  %s0 = inlined_call_operand.vmem [shape: f32[8,2], index: 0, kind: input, shape index: {}]
  %s1 = inlined_call_operand.hbm [shape: f32[2,8,32], index: 1, kind: input, shape index: {}]
  %s2 = inlined_call_operand.hbm [shape: bf16[32,32], index: 2, kind: input, shape index: {}]
  %s3 = inlined_call_operand.vmem [shape: f32[1,32], index: 3, kind: input, shape index: {}]
  %s4 = inlined_call_operand.hbm [shape: f32[2,32], index: 4, kind: output, shape index: {}]
  %s5 = sld [smem:[#allocation0]]
  $region42: #{tpu_custom_call.1} parent=0
    _
  %s7 = ssub.s32 1, %s5
  %s8 = scalar_select 0, %s7, %s5
  $region1: #{tpu_custom_call.1} parent=0
    #allocation4 [shape = 'u8[8192]{0}', space=vmem, size = 0x2000, scoped, tag = 'input window, operand 1, single buffered']
    #allocation5 [shape = 's32[1]{0}', space=sflag, size = 0x4, scoped, tag = 'scoped memory for tpu_custom_call.1']
    #allocation6 [shape = 's32[1]{0}', space=sflag, size = 0x4, scoped, tag = 'scoped memory for tpu_custom_call.1']
    #allocation7 [shape = 'u8[8192]{0}', space=vmem, size = 0x2000, scoped, tag = 'input window, operand 2, single buffered']
    #allocation8 [shape = 's32[1]{0}', space=sflag, size = 0x4, scoped, tag = 'scoped memory for tpu_custom_call.1']
    #allocation9 [shape = 'u8[1024]{0}', space=vmem, size = 0x400, scoped, tag = 'output window, operand 0, single buffered']
    %9 = vsyncpa [#allocation5], 0
    %10 = vsyncpa [#allocation8], 0
    %11 = vsyncpa [#allocation6], 0
    // Predicated region
    $region2: #{tpu_custom_call.1} parent=1 // pred_check
      _
    $region3: #{tpu_custom_call.1} parent=1 // pred_check_branch
      %13 = sbr.rel (0) target = $region5
    $region4: #{tpu_custom_call.1} parent=1 // pred_region
      _
    $region5: #{tpu_custom_call.1} parent=1 // pred_fallthru
      _
    // Predicated region
    $region6: #{tpu_custom_call.1} parent=1 // pred_check
      _
    $region7: #{tpu_custom_call.1} parent=1 // pred_check_branch
      %15 = sbr.rel (0) target = $region9
    $region8: #{tpu_custom_call.1} parent=1 // pred_region
      %s17 = ssub.s32 256, 256
      %18 = vsyncadd [#allocation5], %s17
      %s19 = sshll.u32 [#allocation4], 4
      %s20 = int_to_ptr.vmem [resolvable:$true] %s19
      %25 = dma.hbm_to_vmem [thread:$0]  %s1, 256, %s20, [#allocation5], 128, 128, 8
    $region9: #{tpu_custom_call.1} parent=1 // pred_fallthru
      _
    // Predicated region
    $region10: #{tpu_custom_call.1} parent=1 // pred_check
      _
    $region11: #{tpu_custom_call.1} parent=1 // pred_check_branch
      %27 = sbr.rel (0) target = $region13
    $region12: #{tpu_custom_call.1} parent=1 // pred_region
      %s29 = ssub.s32 256, 256
      %30 = vsyncadd [#allocation8], %s29
      %s31 = sshll.u32 [#allocation7], 4
      %s32 = int_to_ptr.vmem [resolvable:$true] %s31
      %37 = dma.hbm_to_vmem [thread:$0]  %s2, 256, %s32, [#allocation8], 64, 64, 4
    $region13: #{tpu_custom_call.1} parent=1 // pred_fallthru
      _
    // Predicated region
    $region14: #{tpu_custom_call.1} parent=1 // pred_check
      _
    $region15: #{tpu_custom_call.1} parent=1 // pred_check_branch
      %39 = sbr.rel (0) target = $region17
    $region16: #{tpu_custom_call.1} parent=1 // pred_region
      _
    $region17: #{tpu_custom_call.1} parent=1 // pred_fallthru
      _
    // Predicated region
    $region18: #{tpu_custom_call.1} parent=1 // pred_check
      _
    $region19: #{tpu_custom_call.1} parent=1 // pred_check_branch
      %41 = sbr.rel (0) target = $region21
    $region20: #{tpu_custom_call.1} parent=1 // pred_region
      %42 = dma.done [#allocation5], 256
    $region21: #{tpu_custom_call.1} parent=1 // pred_fallthru
      _
    // Predicated region
    $region22: #{tpu_custom_call.1} parent=1 // pred_check
      _
    $region23: #{tpu_custom_call.1} parent=1 // pred_check_branch
      %44 = sbr.rel (0) target = $region25
    $region24: #{tpu_custom_call.1} parent=1 // pred_region
      %45 = dma.done [#allocation8], 256
    $region25: #{tpu_custom_call.1} parent=1 // pred_fallthru
      _
    %p47 = scmp.eq.s32.totalorder 0, 0
    // Predicated region
    $region26: #{tpu_custom_call.1} parent=1 // pred_check
      %p48 = pneg %p47
    $region27: #{tpu_custom_call.1} parent=1 // pred_check_branch
      %50 = sbr.rel (%p48) target = $region29
    $region28: #{tpu_custom_call.1} parent=1 // pred_region
      %v51 = vld [vmem:[%s0] sm:$0xff]
      %vm52 = vcmask 15360
      %v53 = vsel %vm52, %v51, -inf
      %v54 = vrot.slane %v53, 4
      %v55 = vmax.f32 %v53, %v54
      %v56 = vrot.slane %v55, 2
      %v57 = vmax.f32 %v55, %v56
      %v58 = vrot.slane %v57, 1
      %v59 = vmax.f32 %v57, %v58
      %v60 = vsub.f32 %v59, 1.0
      %v61 = vsub.f32 %v59, 0.125
      %v62 = vsub.f32 %v51, %v60
      %v63 = vmax.f32 %v62, 0.0
      %v64 = vsel %vm52, %v63, 0.0
      %v65 = vrot.slane %v64, 4
      %v66 = vadd.f32 %v64, %v65
      %v67 = vrot.slane %v66, 2
      %v68 = vadd.f32 %v66, %v67
      %v69 = vrot.slane %v68, 1
      %v70 = vadd.f32 %v68, %v69
      %v71 = vsub.f32 %v70, 1.0
      %v72 = vsub.f32 %v61, %v60
      %v73 = vmul.f32 %v72, 0.5
      %v74 = vadd.f32 %v60, %v73
      %v75 = vsub.f32 %v51, %v74
      %v76 = vmax.f32 %v75, 0.0
      %v77 = vsel %vm52, %v76, 0.0
      %v78 = vrot.slane %v77, 4
      %v79 = vadd.f32 %v77, %v78
      %v80 = vrot.slane %v79, 2
      %v81 = vadd.f32 %v79, %v80
      %v82 = vrot.slane %v81, 1
      %v83 = vadd.f32 %v81, %v82
      %v84 = vsub.f32 %v83, 1.0
      %v85 = vmul.f32 %v84, %v71
      %vm86 = vcmp.ge.f32.partialorder %v85, 0.0
      %v87 = vsel %vm86, %v74, %v60
      %v88 = vmul.f32 %v73, 0.5
      %v89 = vadd.f32 %v87, %v88
      %v90 = vsub.f32 %v51, %v89
      %v91 = vmax.f32 %v90, 0.0
      %v92 = vsel %vm52, %v91, 0.0
      %v93 = vrot.slane %v92, 4
      %v94 = vadd.f32 %v92, %v93
      %v95 = vrot.slane %v94, 2
      %v96 = vadd.f32 %v94, %v95
      %v97 = vrot.slane %v96, 1
      %v98 = vadd.f32 %v96, %v97
      %v99 = vsub.f32 %v98, 1.0
      %v100 = vmul.f32 %v99, %v71
      %vm101 = vcmp.ge.f32.partialorder %v100, 0.0
      %v102 = vsel %vm101, %v89, %v87
      %v103 = vmul.f32 %v88, 0.5
      %v104 = vadd.f32 %v102, %v103
      %v105 = vsub.f32 %v51, %v104
      %v106 = vmax.f32 %v105, 0.0
      %v107 = vsel %vm52, %v106, 0.0
      %v108 = vrot.slane %v107, 4
      %v109 = vadd.f32 %v107, %v108
      %v110 = vrot.slane %v109, 2
      %v111 = vadd.f32 %v109, %v110
      %v112 = vrot.slane %v111, 1
      %v113 = vadd.f32 %v111, %v112
      %v114 = vsub.f32 %v113, 1.0
      %v115 = vmul.f32 %v114, %v71
      %vm116 = vcmp.ge.f32.partialorder %v115, 0.0
      %v117 = vsel %vm116, %v104, %v102
      %v118 = vmul.f32 %v103, 0.5
      %v119 = vadd.f32 %v117, %v118
      %v120 = vsub.f32 %v51, %v119
      %v121 = vmax.f32 %v120, 0.0
      %v122 = vsel %vm52, %v121, 0.0
      %v123 = vrot.slane %v122, 4
      %v124 = vadd.f32 %v122, %v123
      %v125 = vrot.slane %v124, 2
      %v126 = vadd.f32 %v124, %v125
      %v127 = vrot.slane %v126, 1
      %v128 = vadd.f32 %v126, %v127
      %v129 = vsub.f32 %v128, 1.0
      %v130 = vmul.f32 %v129, %v71
      %vm131 = vcmp.ge.f32.partialorder %v130, 0.0
      %v132 = vsel %vm131, %v119, %v117
      %v133 = vmul.f32 %v118, 0.5
      %v134 = vadd.f32 %v132, %v133
      %v135 = vsub.f32 %v51, %v134
      %v136 = vmax.f32 %v135, 0.0
      %v137 = vsel %vm52, %v136, 0.0
      %v138 = vrot.slane %v137, 4
      %v139 = vadd.f32 %v137, %v138
      %v140 = vrot.slane %v139, 2
      %v141 = vadd.f32 %v139, %v140
      %v142 = vrot.slane %v141, 1
      %v143 = vadd.f32 %v141, %v142
      %v144 = vsub.f32 %v143, 1.0
      %v145 = vmul.f32 %v144, %v71
      %vm146 = vcmp.ge.f32.partialorder %v145, 0.0
      %v147 = vsel %vm146, %v134, %v132
      %v148 = vmul.f32 %v133, 0.5
      %v149 = vadd.f32 %v147, %v148
      %v150 = vsub.f32 %v51, %v149
      %v151 = vmax.f32 %v150, 0.0
      %v152 = vsel %vm52, %v151, 0.0
      %v153 = vrot.slane %v152, 4
      %v154 = vadd.f32 %v152, %v153
      %v155 = vrot.slane %v154, 2
      %v156 = vadd.f32 %v154, %v155
      %v157 = vrot.slane %v156, 1
      %v158 = vadd.f32 %v156, %v157
      %v159 = vsub.f32 %v158, 1.0
      %v160 = vmul.f32 %v159, %v71
      %vm161 = vcmp.ge.f32.partialorder %v160, 0.0
      %v162 = vsel %vm161, %v149, %v147
      %v163 = vmul.f32 %v148, 0.5
      %v164 = vadd.f32 %v162, %v163
      %v165 = vsub.f32 %v51, %v164
      %v166 = vmax.f32 %v165, 0.0
      %v167 = vsel %vm52, %v166, 0.0
      %v168 = vrot.slane %v167, 4
      %v169 = vadd.f32 %v167, %v168
      %v170 = vrot.slane %v169, 2
      %v171 = vadd.f32 %v169, %v170
      %v172 = vrot.slane %v171, 1
      %v173 = vadd.f32 %v171, %v172
      %v174 = vsub.f32 %v173, 1.0
      %v175 = vmul.f32 %v174, %v71
      %vm176 = vcmp.ge.f32.partialorder %v175, 0.0
      %v177 = vsel %vm176, %v164, %v162
      %v178 = vmul.f32 %v163, 0.5
      %v179 = vadd.f32 %v177, %v178
      %v180 = vsub.f32 %v51, %v179
      %v181 = vmax.f32 %v180, 0.0
      %v182 = vsel %vm52, %v181, 0.0
      %v183 = vrot.slane %v182, 4
      %v184 = vadd.f32 %v182, %v183
      %v185 = vrot.slane %v184, 2
      %v186 = vadd.f32 %v184, %v185
      %v187 = vrot.slane %v186, 1
      %v188 = vadd.f32 %v186, %v187
      %v189 = vsub.f32 %v188, 1.0
      %v190 = vmul.f32 %v189, %v71
      %vm191 = vcmp.ge.f32.partialorder %v190, 0.0
      %v192 = vsel %vm191, %v179, %v177
      %v193 = vmul.f32 %v178, 0.5
      %v194 = vadd.f32 %v192, %v193
      %v195 = vsub.f32 %v51, %v194
      %v196 = vmax.f32 %v195, 0.0
      %v197 = vsel %vm52, %v196, 0.0
      %v198 = vrot.slane %v197, 4
      %v199 = vadd.f32 %v197, %v198
      %v200 = vrot.slane %v199, 2
      %v201 = vadd.f32 %v199, %v200
      %v202 = vrot.slane %v201, 1
      %v203 = vadd.f32 %v201, %v202
      %v204 = vsub.f32 %v203, 1.0
      %v205 = vmul.f32 %v204, %v71
      %vm206 = vcmp.ge.f32.partialorder %v205, 0.0
      %v207 = vsel %vm206, %v194, %v192
      %v208 = vmul.f32 %v193, 0.5
      %v209 = vadd.f32 %v207, %v208
      %v210 = vsub.f32 %v51, %v209
      %v211 = vmax.f32 %v210, 0.0
      %v212 = vsel %vm52, %v211, 0.0
      %v213 = vrot.slane %v212, 4
      %v214 = vadd.f32 %v212, %v213
      %v215 = vrot.slane %v214, 2
      %v216 = vadd.f32 %v214, %v215
      %v217 = vrot.slane %v216, 1
      %v218 = vadd.f32 %v216, %v217
      %v219 = vsub.f32 %v218, 1.0
      %v220 = vmul.f32 %v219, %v71
      %vm221 = vcmp.ge.f32.partialorder %v220, 0.0
      %v222 = vsel %vm221, %v209, %v207
      %v223 = vmul.f32 %v208, 0.5
      %v224 = vadd.f32 %v222, %v223
      %v225 = vsub.f32 %v51, %v224
      %v226 = vmax.f32 %v225, 0.0
      %v227 = vsel %vm52, %v226, 0.0
      %v228 = vrot.slane %v227, 4
      %v229 = vadd.f32 %v227, %v228
      %v230 = vrot.slane %v229, 2
      %v231 = vadd.f32 %v229, %v230
      %v232 = vrot.slane %v231, 1
      %v233 = vadd.f32 %v231, %v232
      %v234 = vsub.f32 %v233, 1.0
      %v235 = vmul.f32 %v234, %v71
      %vm236 = vcmp.ge.f32.partialorder %v235, 0.0
      %v237 = vsel %vm236, %v224, %v222
      %v238 = vmul.f32 %v223, 0.5
      %v239 = vadd.f32 %v237, %v238
      %v240 = vsub.f32 %v51, %v239
      %v241 = vmax.f32 %v240, 0.0
      %v242 = vsel %vm52, %v241, 0.0
      %v243 = vrot.slane %v242, 4
      %v244 = vadd.f32 %v242, %v243
      %v245 = vrot.slane %v244, 2
      %v246 = vadd.f32 %v244, %v245
      %v247 = vrot.slane %v246, 1
      %v248 = vadd.f32 %v246, %v247
      %v249 = vsub.f32 %v248, 1.0
      %v250 = vmul.f32 %v249, %v71
      %vm251 = vcmp.ge.f32.partialorder %v250, 0.0
      %v252 = vsel %vm251, %v239, %v237
      %v253 = vmul.f32 %v238, 0.5
      %v254 = vadd.f32 %v252, %v253
      %v255 = vsub.f32 %v51, %v254
      %v256 = vmax.f32 %v255, 0.0
      %v257 = vsel %vm52, %v256, 0.0
      %v258 = vrot.slane %v257, 4
      %v259 = vadd.f32 %v257, %v258
      %v260 = vrot.slane %v259, 2
      %v261 = vadd.f32 %v259, %v260
      %v262 = vrot.slane %v261, 1
      %v263 = vadd.f32 %v261, %v262
      %v264 = vsub.f32 %v263, 1.0
      %v265 = vmul.f32 %v264, %v71
      %vm266 = vcmp.ge.f32.partialorder %v265, 0.0
      %v267 = vsel %vm266, %v254, %v252
      %v268 = vmul.f32 %v253, 0.5
      %v269 = vadd.f32 %v267, %v268
      %v270 = vsub.f32 %v51, %v269
      %v271 = vmax.f32 %v270, 0.0
      %v272 = vsel %vm52, %v271, 0.0
      %v273 = vrot.slane %v272, 4
      %v274 = vadd.f32 %v272, %v273
      %v275 = vrot.slane %v274, 2
      %v276 = vadd.f32 %v274, %v275
      %v277 = vrot.slane %v276, 1
      %v278 = vadd.f32 %v276, %v277
      %v279 = vsub.f32 %v278, 1.0
      %v280 = vmul.f32 %v279, %v71
      %vm281 = vcmp.ge.f32.partialorder %v280, 0.0
      %v282 = vsel %vm281, %v269, %v267
      %v283 = vmul.f32 %v268, 0.5
      %v284 = vadd.f32 %v282, %v283
      %v285 = vsub.f32 %v51, %v284
      %v286 = vmax.f32 %v285, 0.0
      %v287 = vsel %vm52, %v286, 0.0
      %v288 = vrot.slane %v287, 4
      %v289 = vadd.f32 %v287, %v288
      %v290 = vrot.slane %v289, 2
      %v291 = vadd.f32 %v289, %v290
      %v292 = vrot.slane %v291, 1
      %v293 = vadd.f32 %v291, %v292
      %v294 = vsub.f32 %v293, 1.0
      %v295 = vmul.f32 %v294, %v71
      %vm296 = vcmp.ge.f32.partialorder %v295, 0.0
      %v297 = vsel %vm296, %v284, %v282
      %v298 = vmul.f32 %v283, 0.5
      %v299 = vadd.f32 %v297, %v298
      %v300 = vsub.f32 %v51, %v299
      %v301 = vmax.f32 %v300, 0.0
      %v302 = vsel %vm52, %v301, 0.0
      %v303 = vrot.slane %v302, 4
      %v304 = vadd.f32 %v302, %v303
      %v305 = vrot.slane %v304, 2
      %v306 = vadd.f32 %v304, %v305
      %v307 = vrot.slane %v306, 1
      %v308 = vadd.f32 %v306, %v307
      %v309 = vsub.f32 %v308, 1.0
      %v310 = vmul.f32 %v309, %v71
      %vm311 = vcmp.ge.f32.partialorder %v310, 0.0
      %v312 = vsel %vm311, %v299, %v297
      %v313 = vmul.f32 %v298, 0.5
      %v314 = vadd.f32 %v312, %v313
      %v315 = vsub.f32 %v51, %v314
      %v316 = vmax.f32 %v315, 0.0
      %v317 = vsel %vm52, %v316, 0.0
      %v318 = vrot.slane %v317, 4
      %v319 = vadd.f32 %v317, %v318
      %v320 = vrot.slane %v319, 2
      %v321 = vadd.f32 %v319, %v320
      %v322 = vrot.slane %v321, 1
      %v323 = vadd.f32 %v321, %v322
      %v324 = vsub.f32 %v323, 1.0
      %v325 = vmul.f32 %v324, %v71
      %vm326 = vcmp.ge.f32.partialorder %v325, 0.0
      %v327 = vsel %vm326, %v314, %v312
      %v328 = vmul.f32 %v313, 0.5
      %v329 = vadd.f32 %v327, %v328
      %v330 = vsub.f32 %v51, %v329
      %v331 = vmax.f32 %v330, 0.0
      %v332 = vsel %vm52, %v331, 0.0
      %v333 = vrot.slane %v332, 4
      %v334 = vadd.f32 %v332, %v333
      %v335 = vrot.slane %v334, 2
      %v336 = vadd.f32 %v334, %v335
      %v337 = vrot.slane %v336, 1
      %v338 = vadd.f32 %v336, %v337
      %v339 = vsub.f32 %v338, 1.0
      %v340 = vmul.f32 %v339, %v71
      %vm341 = vcmp.ge.f32.partialorder %v340, 0.0
      %v342 = vsel %vm341, %v329, %v327
      %v343 = vmul.f32 %v328, 0.5
      %v344 = vadd.f32 %v342, %v343
      %v345 = vsub.f32 %v51, %v344
      %v346 = vmax.f32 %v345, 0.0
      %v347 = vsel %vm52, %v346, 0.0
      %v348 = vrot.slane %v347, 4
      %v349 = vadd.f32 %v347, %v348
      %v350 = vrot.slane %v349, 2
      %v351 = vadd.f32 %v349, %v350
      %v352 = vrot.slane %v351, 1
      %v353 = vadd.f32 %v351, %v352
      %v354 = vsub.f32 %v353, 1.0
      %v355 = vmul.f32 %v354, %v71
      %vm356 = vcmp.ge.f32.partialorder %v355, 0.0
      %v357 = vsel %vm356, %v344, %v342
      %v358 = vmul.f32 %v343, 0.5
      %v359 = vadd.f32 %v357, %v358
      %v360 = vsub.f32 %v51, %v359
      %v361 = vmax.f32 %v360, 0.0
      %v362 = vsel %vm52, %v361, 0.0
      %v363 = vrot.slane %v362, 4
      %v364 = vadd.f32 %v362, %v363
      %v365 = vrot.slane %v364, 2
      %v366 = vadd.f32 %v364, %v365
      %v367 = vrot.slane %v366, 1
      %v368 = vadd.f32 %v366, %v367
      %v369 = vsub.f32 %v368, 1.0
      %v370 = vmul.f32 %v369, %v71
      %vm371 = vcmp.ge.f32.partialorder %v370, 0.0
      %v372 = vsel %vm371, %v359, %v357
      %v373 = vmul.f32 %v358, 0.5
      %v374 = vadd.f32 %v372, %v373
      %v375 = vsub.f32 %v51, %v374
      %v376 = vmax.f32 %v375, 0.0
      %v377 = vsel %vm52, %v376, 0.0
      %v378 = vrot.slane %v377, 4
      %v379 = vadd.f32 %v377, %v378
      %v380 = vrot.slane %v379, 2
      %v381 = vadd.f32 %v379, %v380
      %v382 = vrot.slane %v381, 1
      %v383 = vadd.f32 %v381, %v382
      %v384 = vsub.f32 %v383, 1.0
      %v385 = vmul.f32 %v384, %v71
      %vm386 = vcmp.ge.f32.partialorder %v385, 0.0
      %v387 = vsel %vm386, %v374, %v372
      %v388 = vmul.f32 %v373, 0.5
      %v389 = vadd.f32 %v387, %v388
      %v390 = vsub.f32 %v51, %v389
      %v391 = vmax.f32 %v390, 0.0
      %v392 = vsel %vm52, %v391, 0.0
      %v393 = vrot.slane %v392, 4
      %v394 = vadd.f32 %v392, %v393
      %v395 = vrot.slane %v394, 2
      %v396 = vadd.f32 %v394, %v395
      %v397 = vrot.slane %v396, 1
      %v398 = vadd.f32 %v396, %v397
      %v399 = vsub.f32 %v398, 1.0
      %v400 = vmul.f32 %v399, %v71
      %vm401 = vcmp.ge.f32.partialorder %v400, 0.0
      %v402 = vsel %vm401, %v389, %v387
      %v403 = vmul.f32 %v388, 0.5
      %v404 = vadd.f32 %v402, %v403
      %v405 = vsub.f32 %v51, %v404
      %v406 = vmax.f32 %v405, 0.0
      %v407 = vsel %vm52, %v406, 0.0
      %v408 = vrot.slane %v407, 4
      %v409 = vadd.f32 %v407, %v408
      %v410 = vrot.slane %v409, 2
      %v411 = vadd.f32 %v409, %v410
      %v412 = vrot.slane %v411, 1
      %v413 = vadd.f32 %v411, %v412
      %v414 = vsub.f32 %v413, 1.0
      %v415 = vmul.f32 %v414, %v71
      %vm416 = vcmp.ge.f32.partialorder %v415, 0.0
      %v417 = vsel %vm416, %v404, %v402
      %v418 = vmul.f32 %v403, 0.5
      %v419 = vadd.f32 %v417, %v418
      %v420 = vsub.f32 %v51, %v419
      %v421 = vmax.f32 %v420, 0.0
      %v422 = vsel %vm52, %v421, 0.0
      %v423 = vrot.slane %v422, 4
      %v424 = vadd.f32 %v422, %v423
      %v425 = vrot.slane %v424, 2
      %v426 = vadd.f32 %v424, %v425
      %v427 = vrot.slane %v426, 1
      %v428 = vadd.f32 %v426, %v427
      %v429 = vsub.f32 %v428, 1.0
      %v430 = vmul.f32 %v429, %v71
      %vm431 = vcmp.ge.f32.partialorder %v430, 0.0
      %v432 = vsel %vm431, %v419, %v417
      %v433 = vmul.f32 %v418, 0.5
      %v434 = vadd.f32 %v432, %v433
      %v435 = vsub.f32 %v51, %v434
      %v436 = vmax.f32 %v435, 0.0
      %v437 = vsel %vm52, %v436, 0.0
      %v438 = vrot.slane %v437, 4
      %v439 = vadd.f32 %v437, %v438
      %v440 = vrot.slane %v439, 2
      %v441 = vadd.f32 %v439, %v440
      %v442 = vrot.slane %v441, 1
      %v443 = vadd.f32 %v441, %v442
      %v444 = vsub.f32 %v443, 1.0
      %v445 = vmul.f32 %v444, %v71
      %vm446 = vcmp.ge.f32.partialorder %v445, 0.0
      %v447 = vsel %vm446, %v434, %v432
      %v448 = vmul.f32 %v433, 0.5
      %v449 = vadd.f32 %v447, %v448
      %v450 = vsub.f32 %v51, %v449
      %v451 = vmax.f32 %v450, 0.0
      %v452 = vsel %vm52, %v451, 0.0
      %v453 = vrot.slane %v452, 4
      %v454 = vadd.f32 %v452, %v453
      %v455 = vrot.slane %v454, 2
      %v456 = vadd.f32 %v454, %v455
      %v457 = vrot.slane %v456, 1
      %v458 = vadd.f32 %v456, %v457
      %v459 = vsub.f32 %v458, 1.0
      %v460 = vmul.f32 %v459, %v71
      %vm461 = vcmp.ge.f32.partialorder %v460, 0.0
      %v462 = vsel %vm461, %v449, %v447
      %v463 = vmul.f32 %v448, 0.5
      %v464 = vadd.f32 %v462, %v463
      %v465 = vsub.f32 %v51, %v464
      %v466 = vmax.f32 %v465, 0.0
      %v467 = vsel %vm52, %v466, 0.0
      %v468 = vrot.slane %v467, 4
      %v469 = vadd.f32 %v467, %v468
      %v470 = vrot.slane %v469, 2
      %v471 = vadd.f32 %v469, %v470
      %v472 = vrot.slane %v471, 1
      %v473 = vadd.f32 %v471, %v472
      %v474 = vsub.f32 %v473, 1.0
      %v475 = vmul.f32 %v474, %v71
      %vm476 = vcmp.ge.f32.partialorder %v475, 0.0
      %v477 = vsel %vm476, %v464, %v462
      %v478 = vmul.f32 %v463, 0.5
      %v479 = vadd.f32 %v477, %v478
      %v480 = vsub.f32 %v51, %v479
      %v481 = vmax.f32 %v480, 0.0
      %v482 = vsel %vm52, %v481, 0.0
      %v483 = vrot.slane %v482, 4
      %v484 = vadd.f32 %v482, %v483
      %v485 = vrot.slane %v484, 2
      %v486 = vadd.f32 %v484, %v485
      %v487 = vrot.slane %v486, 1
      %v488 = vadd.f32 %v486, %v487
      %v489 = vsub.f32 %v488, 1.0
      %v490 = vmul.f32 %v489, %v71
      %vm491 = vcmp.ge.f32.partialorder %v490, 0.0
      %v492 = vsel %vm491, %v479, %v477
      %v493 = vmul.f32 %v478, 0.5
      %v494 = vadd.f32 %v492, %v493
      %v495 = vsub.f32 %v51, %v494
      %v496 = vmax.f32 %v495, 0.0
      %v497 = vsel %vm52, %v496, 0.0
      %v498 = vrot.slane %v497, 4
      %v499 = vadd.f32 %v497, %v498
      %v500 = vrot.slane %v499, 2
      %v501 = vadd.f32 %v499, %v500
      %v502 = vrot.slane %v501, 1
      %v503 = vadd.f32 %v501, %v502
      %v504 = vsub.f32 %v503, 1.0
      %v505 = vmul.f32 %v504, %v71
      %vm506 = vcmp.ge.f32.partialorder %v505, 0.0
      %v507 = vsel %vm506, %v494, %v492
      %v508 = vmul.f32 %v493, 0.5
      %v509 = vadd.f32 %v507, %v508
      %v510 = vsub.f32 %v51, %v509
      %v511 = vmax.f32 %v510, 0.0
      %v512 = vsel %vm52, %v511, 0.0
      %v513 = vrot.slane %v512, 4
      %v514 = vadd.f32 %v512, %v513
      %v515 = vrot.slane %v514, 2
      %v516 = vadd.f32 %v514, %v515
      %v517 = vrot.slane %v516, 1
      %v518 = vadd.f32 %v516, %v517
      %v519 = vmax.f32 %v518, 1e-30
      %v520 = vrcp.pop %v519
      %v521 = vmul.f32 %v511, %v520
      %522 = vst.msk [vmem:[#allocation2] sm:$0xff] %vm52, %v521
      %vm523 = vcmask 254976
      %524 = vst.msk [vmem:[#allocation3] sm:$0x3] %vm523, 0.0
    $region29: #{tpu_custom_call.1} parent=1 // pred_fallthru
      _
    %v525 = vld [vmem:[#allocation4] sm:$0xff]
    %v526 = vld [vmem:[#allocation4 + $0x8] sm:$0xff]
    %v527 = vpack.c.bf16 %v526, %v525
    %v528 = vld [vmem:[#allocation7] sm:$0xf]
    %v529 = vld [vmem:[#allocation7 + $0x4] sm:$0xf]
    %v530 = vld [vmem:[#allocation7 + $0x8] sm:$0xf]
    %v531 = vld [vmem:[#allocation7 + $0xc] sm:$0xf]
    %v532 = vld [vmem:[%s3] sm:$0x1]
    %v534 = vlaneseq
    %v535 = vshrl.u32 %v534, 7
    %v536 = vsub.s32 0, %v535
    %v537 = vrot.slane %v532, %v536
    %v543 = vunpack.c.l.b16 %v528
    %v544 = vunpack.c.l.b16 %v529
    %v545 = vunpack.c.l.b16 %v530
    %v546 = vunpack.c.l.b16 %v531
    %v547 = vpack.c.b16 %v544, %v543
    %v548 = vpack.c.b16 %v546, %v545
    %vm551 = vcmask 261120
    %v553 = vsel %vm551, %v527, 0
    %555 = vmatprep.subr.bf16.mxu0 0
    %556 = vmatpush1.bf16.msra.mxu0 0
    %557 = vmatprep.subr.bf16.mxu0 0
    %558 = vmatpush1.bf16.msra.mxu0 0
    %559 = vmatprep.subr.bf16.mxu0 0
    %560 = vmatpush1.bf16.msra.mxu0 0
    %561 = vmatprep.subr.bf16.mxu0 0
    %562 = vmatpush1.bf16.msra.mxu0 0
    %563 = vmatprep.subr.bf16.mxu0 0
    %564 = vmatpush1.bf16.msra.mxu0 0
    %565 = vmatprep.subr.bf16.mxu0 0
    %566 = vmatpush1.bf16.msra.mxu0 0
    %567 = vmatprep.subr.bf16.mxu0 0
    %568 = vmatpush1.bf16.msra.mxu0 %v548
    %569 = vmatprep.subr.bf16.mxu0 0
    %570 = vmatpush1.bf16.msra.mxu0 %v547
    %571 = vmatprep.subr.bf16.mxu0 0
    %572 = vmatpush2.bf16.msra.mxu0 0
    %573 = vmatprep.subr.bf16.mxu0 0
    %574 = vmatpush2.bf16.msra.mxu0 0
    %575 = vmatprep.subr.bf16.mxu0 0
    %576 = vmatpush2.bf16.msra.mxu0 0
    %577 = vmatprep.subr.bf16.mxu0 0
    %578 = vmatpush2.bf16.msra.mxu0 0
    %579 = vmatprep.subr.bf16.mxu0 0
    %580 = vmatpush2.bf16.msra.mxu0 0
    %581 = vmatprep.subr.bf16.mxu0 0
    %582 = vmatpush2.bf16.msra.mxu0 0
    %583 = vmatprep.subr.bf16.mxu0 0
    %584 = vmatpush2.bf16.msra.mxu0 0
    %585 = vmatprep.subr.bf16.mxu0 0
    %586 = vmatpush2.bf16.msra.mxu0 0
    %587 = vmatprep.mubr.bf16.mxu0 0
    %588 = vmatmul.mubr.bf16.gmra.mxu0 %v553
    %v589 = vpop.f32.mrf.mxu0
    %v590 = vadd.f32 %v537, %v589
    %v591 = vpop.f32.mrf.mxu0
    %v592 = vpop.f32.mrf.mxu0
    %v593 = vadd.f32 %v537, %v592
    %v594 = vpop.f32.mrf.mxu0
    %595 = vdwg.mxu0
    %v596 = vxor.u32 %v590, 2147483648
    %v597 = vxor.u32 %v593, 2147483648
    %v598 = vmul.f32 %v596, 1.442695
    %v599 = vpow.pop %v598
    %v600 = vmul.f32 %v597, 1.442695
    %v601 = vpow.pop %v600
    %v602 = vadd.f32 %v599, 1.0
    %v603 = vadd.f32 %v601, 1.0
    %v604 = vrcp.pop %v602
    %v605 = vmul.f32 1.0, %v604
    %v606 = vrcp.pop %v603
    %v607 = vmul.f32 1.0, %v606
    %v608 = vld [vmem:[#allocation2] sm:$0xff]
    %609 = vxpose.xlu0.b32.start [1/16] %v608, 128
    %610 = vxpose.xlu0.b32.cont [2/16] 0.0, 128
    %611 = vxpose.xlu0.b32.cont [3/16] 0.0, 128
    %612 = vxpose.xlu0.b32.cont [4/16] 0.0, 128
    %613 = vxpose.xlu0.b32.cont [5/16] 0.0, 128
    %614 = vxpose.xlu0.b32.cont [6/16] 0.0, 128
    %615 = vxpose.xlu0.b32.cont [7/16] 0.0, 128
    %616 = vxpose.xlu0.b32.cont [8/16] 0.0, 128
    %617 = vxpose.xlu0.b32.cont [9/16] 0.0, 128
    %618 = vxpose.xlu0.b32.cont [10/16] 0.0, 128
    %619 = vxpose.xlu0.b32.cont [11/16] 0.0, 128
    %620 = vxpose.xlu0.b32.cont [12/16] 0.0, 128
    %621 = vxpose.xlu0.b32.cont [13/16] 0.0, 128
    %622 = vxpose.xlu0.b32.cont [14/16] 0.0, 128
    %623 = vxpose.xlu0.b32.cont [15/16] 0.0, 128
    %624 = vxpose.xlu0.b32.end [16/16] 0.0, 128
    %v625 = vpop.trf.xlu0
    %v626 = vpop.trf.xlu0
    %v627 = vpop.trf.xlu0
    %v628 = vpop.trf.xlu0
    %v629 = vpop.trf.xlu0
    %v630 = vpop.trf.xlu0
    %v631 = vpop.trf.xlu0
    %v632 = vpop.trf.xlu0
    %v633 = vpop.trf.xlu0
    %v634 = vpop.trf.xlu0
    %v635 = vpop.trf.xlu0
    %v636 = vpop.trf.xlu0
    %v637 = vpop.trf.xlu0
    %v638 = vpop.trf.xlu0
    %v639 = vpop.trf.xlu0
    %v640 = vpop.trf.xlu0
    %v641 = vlaneseq
    %v642 = vshrl.u32 %v641, 7
    %v643 = vsub.s32 0, %v642
    %v644 = vrot.slane %v625, %v643
    %646 = vbcast.lane.b32.xlu0 %v644, 256
    %v647 = vpop.permute.xlu0 %646
    %v648 = vlaneseq
    %v649 = vshrl.u32 %v648, 7
    %v650 = vsub.s32 1, %v649
    %v651 = vrot.slane %v625, %v650
    %653 = vbcast.lane.b32.xlu0 %v651, 256
    %v654 = vpop.permute.xlu0 %653
    %v655 = vld [vmem:[#allocation3] sm:$0x3]
    %v656 = vmul.f32 %v647, %v525
    %v657 = vmul.f32 %v654, %v526
    %v658 = vmul.f32 %v656, %v605
    %v659 = vmul.f32 %v657, %v607
    %v660 = vsel %vm551, %v658, 0.0
    %v661 = vrot.slane %v660, 4
    %v662 = vadd.f32 %v660, %v661
    %v663 = vrot.slane %v662, 2
    %v664 = vadd.f32 %v662, %v663
    %v665 = vrot.slane %v664, 1
    %v666 = vadd.f32 %v664, %v665
    %v667 = vsel %vm551, %v659, 0.0
    %v668 = vrot.slane %v667, 4
    %v669 = vadd.f32 %v667, %v668
    %v670 = vrot.slane %v669, 2
    %v671 = vadd.f32 %v669, %v670
    %v672 = vrot.slane %v671, 1
    %v673 = vadd.f32 %v671, %v672
    %vm676 = vcmask 1041409
    %v677 = vsel %vm676, %v673, %v666
    %v679 = vadd.f32 %v655, %v677
    %vm680 = vcmask 254976
    %681 = vst.msk [vmem:[#allocation3] sm:$0x3] %vm680, %v679
    // Predicated region
    $region30: #{tpu_custom_call.1} parent=1 // pred_check
      %p682 = pneg %p47
    $region31: #{tpu_custom_call.1} parent=1 // pred_check_branch
      %684 = sbr.rel (%p682) target = $region33
    $region32: #{tpu_custom_call.1} parent=1 // pred_region
      %v685 = vld [vmem:[#allocation3] sm:$0x3]
      %686 = vst.msk [vmem:[#allocation9] sm:$0x3] %vm680, %v685
    $region33: #{tpu_custom_call.1} parent=1 // pred_fallthru
      _
    // Predicated region
    $region34: #{tpu_custom_call.1} parent=1 // pred_check
      _
    $region35: #{tpu_custom_call.1} parent=1 // pred_check_branch
      %688 = sbr.rel (0) target = $region37
    $region36: #{tpu_custom_call.1} parent=1 // pred_region
      %s690 = ssub.s32 32, 32
      %691 = vsyncadd [#allocation6], %s690
      %s693 = sshll.u32 [#allocation9], 4
      %s694 = int_to_ptr.vmem [resolvable:$true] %s693
      %696 = dma.vmem_to_hbm [thread:$0]  %s694, 32, %s4, [#allocation6]
    $region37: #{tpu_custom_call.1} parent=1 // pred_fallthru
      _
    // Predicated region
    $region38: #{tpu_custom_call.1} parent=1 // pred_check
      _
    $region39: #{tpu_custom_call.1} parent=1 // pred_check_branch
      %698 = sbr.rel (0) target = $region41
    $region40: #{tpu_custom_call.1} parent=1 // pred_region
      %699 = dma.done [#allocation6], 32
    $region41: #{tpu_custom_call.1} parent=1 // pred_fallthru
      _
    %700 = vsyncpa [#allocation5], 1
    %701 = vsyncpa [#allocation8], 1
    %702 = vsyncpa [#allocation6], 1

</llo_original>
